<compile_context>
chip_gen: v6e
topology: v6e:2x2x1
jax: 0.10.0
libtpu: 0.0.40
codegen_flags: <defaults>
</compile_context>

<pallas_src>
import jax
import jax.numpy as jnp
from jax.experimental import pallas as pl
from jax.experimental.pallas import tpu as pltpu


def attention_kernel(feat_ref, hid_ref, Uw_ref, Ww_ref, bias_ref, Aw_ref,
                     alpha_ref, ctx_ref):
    Bt, L, E = feat_ref.shape
    A = Uw_ref.shape[1]

    feat = feat_ref[...]                                   # (Bt, L, E) streamed dtype
    hid = hid_ref[...]                                     # (Bt, D)    f32

    # --- U projection: one big MXU matmul per tile (operands in Uw's dtype,
    #     f32 accumulation). Uw is pre-cast in the wrapper -> no per-step cast.
    feat_m = feat.astype(Uw_ref.dtype)
    if L % 8 == 0:
        # reshape is a pure view (no relayout) when L is a sublane multiple.
        u_hs = jnp.dot(feat_m.reshape(Bt * L, E), Uw_ref[...],
                       preferred_element_type=jnp.float32).reshape(Bt, L, A)
    else:
        # keep the projection 3-D so Mosaic never materializes a relayout copy
        # of the feature tile (reshape crossing (8,128) boundaries is not a view).
        u_hs = jax.lax.dot_general(
            feat_m, Uw_ref[...], (((2,), (0,)), ((), ())),
            preferred_element_type=jnp.float32)            # (Bt, L, A)

    # --- W projection on the small (Bt, D) tile; U_b + W_b pre-folded into one
    #     bias so no (Bt*L, A) broadcast-add is needed after the big matmul.
    w_ah = jnp.dot(hid, Ww_ref[...],
                   preferred_element_type=jnp.float32) + bias_ref[...]   # (Bt, A)

    combined = jnp.tanh(u_hs + w_ah[:, None, :])           # (Bt, L, A) f32

    # Attention scores, lane-dense (Bt, L): multiply by the A row, reduce over A.
    # (A-layer bias omitted: adding a constant leaves softmax unchanged.)
    scores = jnp.sum(combined * Aw_ref[...][None, :, :], axis=-1)        # (Bt, L)

    # Numerically stable softmax over L; divide on the EUP (approx reciprocal).
    m = jnp.max(scores, axis=-1, keepdims=True)
    e = jnp.exp(scores - m)
    s = jnp.sum(e, axis=-1, keepdims=True)
    alpha = e * pl.reciprocal(s, approx=True)              # (Bt, L)
    alpha_ref[...] = alpha.astype(alpha_ref.dtype)

    # context = sum_L alpha * features : VPU multiply + sublane reduce.  The q=1
    # batched MXU matmul wasted 127/255 of each push; this path overlaps with
    # the next tile's U-projection matmul instead.
    ctx = jnp.sum(feat.astype(jnp.float32) * alpha[:, :, None], axis=1)  # (Bt, E)
    ctx_ref[...] = ctx.astype(ctx_ref.dtype)


def attention_forward(features, hidden_state, params, *, block_b=None,
                      mxu_dtype=jnp.bfloat16, stream_bf16=False,
                      vmem_budget_bytes=48 * 1024 * 1024):
    """features (B,L,E), hidden_state (B,D) -> (alpha (B,L), context (B,E)).

    mxu_dtype   : dtype of the U-projection MXU operands (f32 accumulation always).
    stream_bf16 : store features in HBM as bf16 (halves the dominant HBM stream).
    vmem_budget_bytes : per-TensorCore VMEM budget used to size the batch tile
        (48 MiB default is safe for v7x's 64 MiB/TC; v5e/v6e have 128 MiB).
    """
    B, L, E = features.shape
    D = hidden_state.shape[1]
    A = params["U_w"].shape[0]

    features = jnp.asarray(features, jnp.float32)
    hidden_state = jnp.asarray(hidden_state, jnp.float32)
    if stream_bf16:
        features = features.astype(jnp.bfloat16)
    feat_bytes = jnp.dtype(features.dtype).itemsize

    # Pre-transpose / pre-cast weights once (wrapper side): kernel sees MXU-natural
    # (K, N) layouts and never re-casts the resident U weight per grid step.
    Uw_t = jnp.asarray(params["U_w"], jnp.float32).T.astype(mxu_dtype)   # (E, A)
    Ww_t = jnp.asarray(params["W_w"], jnp.float32).T                     # (D, A)
    bias = (jnp.asarray(params["U_b"], jnp.float32)
            + jnp.asarray(params["W_b"], jnp.float32)).reshape(1, A)     # U_b + W_b folded
    Aw = jnp.asarray(params["A_w"], jnp.float32).reshape(1, A)
    # A_b intentionally not passed (cancels inside softmax).

    # ---- batch tile: biggest tile that fits the VMEM budget, targeting >=256
    # fused MXU rows (128 already saturates v5e's 128-wide MXU rows).
    if block_b is None:
        per_row = max(L * E * feat_bytes, 1)               # features bytes per batch row
        cap = max(8, int(0.75 * vmem_budget_bytes) // (2 * per_row))
        block_b = min(B, max(pl.cdiv(256, L), 1), cap)
    if block_b >= B:
        block_b = B                                        # single full-batch tile
    else:
        block_b = max(8, (block_b // 8) * 8)               # sublane-friendly tile
    grid_b = pl.cdiv(B, block_b)                           # ragged last block handled by
                                                           # Pallas -> no jnp.pad copy of
                                                           # features in HBM.

    # ---- explicit VMEM limit from the per-step footprint (defaults are 16/32 MiB).
    weight_bytes = (E * A * jnp.dtype(mxu_dtype).itemsize + D * A * 4 + 2 * A * 4)
    step_bytes = (2 * block_b * L * E * feat_bytes         # double-buffered feature tile
                  + 2 * block_b * D * 4                    # hidden tile
                  + 2 * block_b * (L + E) * 4              # alpha + context outputs
                  + weight_bytes                           # resident weights
                  + 4 * block_b * L * A * 4)               # in-body f32 intermediates
    vmem_limit = int(min(128 * 1024 * 1024, max(32 * 1024 * 1024, 2 * step_bytes)))

    def build(single_buffer_weights):
        def wspec(shape):
            if single_buffer_weights:
                # Constant index_map => never re-DMA'd after step 0; one buffer suffices
                # (halves resident-weight VMEM vs. default double-buffering).
                return pl.BlockSpec(shape, lambda b: (0,) * len(shape),
                                    pipeline_mode=pl.Buffered(1))
            return pl.BlockSpec(shape, lambda b: (0,) * len(shape))

        return pl.pallas_call(
            attention_kernel,
            out_shape=(
                jax.ShapeDtypeStruct((B, L), jnp.float32),
                jax.ShapeDtypeStruct((B, E), jnp.float32),
            ),
            grid_spec=pltpu.PrefetchScalarGridSpec(
                num_scalar_prefetch=0,
                grid=(grid_b,),
                in_specs=[
                    # features: dominant HBM stream (raise to pl.Buffered(3) on v6e
                    # only if profiling shows exposed DMA; not on v7x's 64 MiB VMEM).
                    pl.BlockSpec((block_b, L, E), lambda b: (b, 0, 0)),
                    pl.BlockSpec((block_b, D), lambda b: (b, 0)),         # hidden
                    wspec((E, A)),    # U^T   (resident)
                    wspec((D, A)),    # W^T   (resident)
                    wspec((1, A)),    # folded bias (U_b + W_b)
                    wspec((1, A)),    # A weight row
                ],
                out_specs=[
                    pl.BlockSpec((block_b, L), lambda b: (b, 0)),         # alpha
                    pl.BlockSpec((block_b, E), lambda b: (b, 0)),         # context (2-D, dense vst)
                ],
            ),
            compiler_params=pltpu.CompilerParams(
                dimension_semantics=("parallel",),
                vmem_limit_bytes=vmem_limit),
        )

    args = (features, hidden_state, Uw_t, Ww_t, bias, Aw)
    try:
        alpha, ctx = build(single_buffer_weights=True)(*args)
    except Exception:
        # Fallback if this Pallas version rejects single-buffered resident inputs.
        alpha, ctx = build(single_buffer_weights=False)(*args)
    return alpha, ctx


def init_params(key, encoder_dim, decoder_dim, attention_dim):
    ks = jax.random.split(key, 6)
    # Same shapes as nn.Linear(in, out): weight (out, in), bias (out,)
    return {
        "W_w": jax.random.normal(ks[0], (attention_dim, decoder_dim), jnp.float32) * 0.1,
        "W_b": jax.random.normal(ks[1], (attention_dim,), jnp.float32) * 0.1,
        "U_w": jax.random.normal(ks[2], (attention_dim, encoder_dim), jnp.float32) * 0.1,
        "U_b": jax.random.normal(ks[3], (attention_dim,), jnp.float32) * 0.1,
        "A_w": jax.random.normal(ks[4], (1, attention_dim), jnp.float32) * 0.1,
        "A_b": jax.random.normal(ks[5], (1,), jnp.float32) * 0.1,
    }


def attention_ref(features, hidden_state, p):
    """Pure-JAX reference matching the PyTorch forward exactly."""
    u_hs = features @ p["U_w"].T + p["U_b"]                 # (B, L, A)
    w_ah = hidden_state @ p["W_w"].T + p["W_b"]             # (B, A)
    combined = jnp.tanh(u_hs + w_ah[:, None, :])            # (B, L, A)
    scores = (combined @ p["A_w"].T + p["A_b"])[..., 0]     # (B, L)
    alpha = jax.nn.softmax(scores, axis=1)                  # (B, L)
    ctx = jnp.sum(features * alpha[:, :, None], axis=1)     # (B, E)
    return alpha, ctx


if __name__ == "__main__":
    B, L = 16, 8
    encoder_dim, decoder_dim, attention_dim = 32, 32, 32

    key = jax.random.PRNGKey(0)
    kp, kf, kh, kf2, kh2 = jax.random.split(key, 5)
    params = init_params(kp, encoder_dim, decoder_dim, attention_dim)
    features = jax.random.normal(kf, (B, L, encoder_dim), jnp.float32)
    hidden_state = jax.random.normal(kh, (B, decoder_dim), jnp.float32)

    alpha_ref_v, ctx_ref_v = attention_ref(features, hidden_state, params)

    # 1) f32 MXU path, whole batch in one tile (only the approx reciprocal and
    #    bias folding differ from the reference -> tight tolerance).
    a1, c1 = attention_forward(features, hidden_state, params, mxu_dtype=jnp.float32)
    jax.block_until_ready((a1, c1))
    assert jnp.allclose(a1, alpha_ref_v, atol=1e-2), "alpha mismatch (f32)"
    assert jnp.allclose(c1, ctx_ref_v, atol=2e-2), "context mismatch (f32)"

    # 2) default path: bf16 MXU operands, f32 accumulation.
    a2, c2 = attention_forward(features, hidden_state, params)
    jax.block_until_ready((a2, c2))
    assert jnp.allclose(a2, alpha_ref_v, atol=3e-2), "alpha mismatch (bf16 mxu)"
    assert jnp.allclose(c2, ctx_ref_v, atol=5e-2), "context mismatch (bf16 mxu)"

    # 3) bf16-streamed features (halved HBM traffic) + explicit batch tiling.
    a3, c3 = attention_forward(features, hidden_state, params,
                               block_b=8, stream_bf16=True)
    jax.block_until_ready((a3, c3))
    assert jnp.allclose(a3, alpha_ref_v, atol=3e-2), "alpha mismatch (stream bf16)"
    assert jnp.allclose(c3, ctx_ref_v, atol=6e-2), "context mismatch (stream bf16)"

    # 4) ragged batch (B not a multiple of block_b) — no wrapper-side jnp.pad.
    B2 = 20
    features2 = jax.random.normal(kf2, (B2, L, encoder_dim), jnp.float32)
    hidden2 = jax.random.normal(kh2, (B2, decoder_dim), jnp.float32)
    ar, cr = attention_ref(features2, hidden2, params)
    a4, c4 = attention_forward(features2, hidden2, params,
                               block_b=8, mxu_dtype=jnp.float32)
    jax.block_until_ready((a4, c4))
    assert jnp.allclose(a4, ar, atol=1e-2), "alpha mismatch (ragged)"
    assert jnp.allclose(c4, cr, atol=2e-2), "context mismatch (ragged)"

    print("KERNEL_OK")
</pallas_src>

<mosaic_0001>
module attributes {stable_mosaic.version = 11 : i64} {
  func.func @attention_kernel(%arg0: i32, %arg1: memref<16x8x32xf32, #tpu.memory_space<vmem>>, %arg2: memref<16x32xf32, #tpu.memory_space<vmem>>, %arg3: memref<32x32xf32, #tpu.memory_space<vmem>>, %arg4: memref<32x32xf32, #tpu.memory_space<vmem>>, %arg5: memref<1x32xf32, #tpu.memory_space<vmem>>, %arg6: memref<1x32xf32, #tpu.memory_space<vmem>>, %arg7: memref<16x8xf32, #tpu.memory_space<vmem>>, %arg8: memref<16x32xf32, #tpu.memory_space<vmem>>) attributes {dimension_semantics = [#tpu.dimension_semantics<parallel>], iteration_bounds = array<i64: 1>, scalar_prefetch = 0 : i64, scratch_operands = 0 : i64, tpu.core_type = #tpu.core_type<tc>, window_params = [{transform_indices = @transform_0, window_bounds = array<i64: 16, 8, 32>}, {transform_indices = @transform_1, window_bounds = array<i64: 16, 32>}, {pipeline_mode = #tpu.pipeline_mode<synchronous>, transform_indices = @transform_2, window_bounds = array<i64: 32, 32>}, {pipeline_mode = #tpu.pipeline_mode<synchronous>, transform_indices = @transform_3, window_bounds = array<i64: 32, 32>}, {pipeline_mode = #tpu.pipeline_mode<synchronous>, transform_indices = @transform_4, window_bounds = array<i64: 1, 32>}, {pipeline_mode = #tpu.pipeline_mode<synchronous>, transform_indices = @transform_5, window_bounds = array<i64: 1, 32>}, {transform_indices = @transform_6, window_bounds = array<i64: 16, 8>}, {transform_indices = @transform_7, window_bounds = array<i64: 16, 32>}]} {
    %c0 = arith.constant 0 : index
    %c0_0 = arith.constant 0 : index
    %c0_1 = arith.constant 0 : index
    %0 = vector.load %arg1[%c0, %c0_0, %c0_1] : memref<16x8x32xf32, #tpu.memory_space<vmem>>, vector<16x8x32xf32>
    %c0_2 = arith.constant 0 : index
    %c0_3 = arith.constant 0 : index
    %1 = vector.load %arg2[%c0_2, %c0_3] : memref<16x32xf32, #tpu.memory_space<vmem>>, vector<16x32xf32>
    %2 = vector.shape_cast %0 : vector<16x8x32xf32> to vector<128x32xf32>
    %c0_4 = arith.constant 0 : index
    %c0_5 = arith.constant 0 : index
    %3 = vector.load %arg3[%c0_4, %c0_5] : memref<32x32xf32, #tpu.memory_space<vmem>>, vector<32x32xf32>
    %cst = arith.constant dense<0.000000e+00> : vector<128x32xf32>
    %4 = tpu.matmul %2, %3, %cst {dimension_numbers = #tpu.dot_dimension_numbers<[1], [0], [0], [1], [0, 0, 1, 1], [], []>} : vector<128x32xf32>, vector<32x32xf32>, vector<128x32xf32> -> vector<128x32xf32>
    %5 = vector.shape_cast %4 : vector<128x32xf32> to vector<16x8x32xf32>
    %c0_6 = arith.constant 0 : index
    %c0_7 = arith.constant 0 : index
    %6 = vector.load %arg4[%c0_6, %c0_7] : memref<32x32xf32, #tpu.memory_space<vmem>>, vector<32x32xf32>
    %cst_8 = arith.constant dense<0.000000e+00> : vector<16x32xf32>
    %7 = tpu.matmul %1, %6, %cst_8 {dimension_numbers = #tpu.dot_dimension_numbers<[1], [0], [0], [1], [0, 0, 1, 1], [], []>} : vector<16x32xf32>, vector<32x32xf32>, vector<16x32xf32> -> vector<16x32xf32>
    %c0_9 = arith.constant 0 : index
    %c0_10 = arith.constant 0 : index
    %8 = vector.load %arg5[%c0_9, %c0_10] : memref<1x32xf32, #tpu.memory_space<vmem>>, vector<1x32xf32>
    %9 = vector.broadcast %8 : vector<1x32xf32> to vector<16x32xf32>
    %10 = arith.addf %7, %9 : vector<16x32xf32>
    %11 = vector.shape_cast %10 : vector<16x32xf32> to vector<16x1x32xf32>
    %12 = vector.broadcast %11 : vector<16x1x32xf32> to vector<16x8x32xf32>
    %13 = arith.addf %5, %12 : vector<16x8x32xf32>
    %14 = math.tanh %13 : vector<16x8x32xf32>
    %c0_11 = arith.constant 0 : index
    %c0_12 = arith.constant 0 : index
    %15 = vector.load %arg6[%c0_11, %c0_12] : memref<1x32xf32, #tpu.memory_space<vmem>>, vector<1x32xf32>
    %16 = vector.shape_cast %15 : vector<1x32xf32> to vector<1x1x32xf32>
    %17 = vector.broadcast %16 : vector<1x1x32xf32> to vector<16x8x32xf32>
    %18 = arith.mulf %14, %17 : vector<16x8x32xf32>
    %cst_13 = arith.constant dense<0.000000e+00> : vector<16x8xf32>
    %19 = vector.multi_reduction <add>, %18, %cst_13 [2] : vector<16x8x32xf32> to vector<16x8xf32>
    %cst_14 = arith.constant dense<0xFF800000> : vector<16xf32>
    %20 = vector.multi_reduction <maximumf>, %19, %cst_14 [1] : vector<16x8xf32> to vector<16xf32>
    %21 = vector.shape_cast %20 : vector<16xf32> to vector<16x1xf32>
    %22 = vector.broadcast %21 : vector<16x1xf32> to vector<16x8xf32>
    %23 = arith.subf %19, %22 : vector<16x8xf32>
    %24 = math.exp %23 : vector<16x8xf32>
    %cst_15 = arith.constant dense<0.000000e+00> : vector<16xf32>
    %25 = vector.multi_reduction <add>, %24, %cst_15 [1] : vector<16x8xf32> to vector<16xf32>
    %26 = vector.shape_cast %25 : vector<16xf32> to vector<16x1xf32>
    %27 = tpu.reciprocal %26 {approx = true} : vector<16x1xf32> -> vector<16x1xf32>
    %28 = vector.broadcast %27 : vector<16x1xf32> to vector<16x8xf32>
    %29 = arith.mulf %24, %28 : vector<16x8xf32>
    %c0_16 = arith.constant 0 : index
    %c0_17 = arith.constant 0 : index
    %30 = vector.load %arg7[%c0_16, %c0_17] : memref<16x8xf32, #tpu.memory_space<vmem>>, vector<16x8xf32>
    tpu.vector_store %arg7[%c0_16, %c0_17], %29 {strides = array<i32>} : memref<16x8xf32, #tpu.memory_space<vmem>>, vector<16x8xf32>,
    %31 = vector.shape_cast %29 : vector<16x8xf32> to vector<16x8x1xf32>
    %32 = vector.broadcast %31 : vector<16x8x1xf32> to vector<16x8x32xf32>
    %33 = arith.mulf %0, %32 : vector<16x8x32xf32>
    %cst_18 = arith.constant dense<0.000000e+00> : vector<16x32xf32>
    %34 = vector.multi_reduction <add>, %33, %cst_18 [1] : vector<16x8x32xf32> to vector<16x32xf32>
    %c0_19 = arith.constant 0 : index
    %c0_20 = arith.constant 0 : index
    %35 = vector.load %arg8[%c0_19, %c0_20] : memref<16x32xf32, #tpu.memory_space<vmem>>, vector<16x32xf32>
    tpu.vector_store %arg8[%c0_19, %c0_20], %34 {strides = array<i32>} : memref<16x32xf32, #tpu.memory_space<vmem>>, vector<16x32xf32>,
    return
  }
  func.func @transform_0(%arg0: i32) -> (i32, i32, i32) {
    %c0_i32 = arith.constant 0 : i32
    %c0_i32_0 = arith.constant 0 : i32
    %c0_i32_1 = arith.constant 0 : i32
    return %arg0, %c0_i32, %c0_i32_0 : i32, i32, i32
  }
  func.func @transform_1(%arg0: i32) -> (i32, i32) {
    %c0_i32 = arith.constant 0 : i32
    %c0_i32_0 = arith.constant 0 : i32
    return %arg0, %c0_i32 : i32, i32
  }
  func.func @transform_2(%arg0: i32) -> (i32, i32) {
    %c0_i32 = arith.constant 0 : i32
    %c0_i32_0 = arith.constant 0 : i32
    %c0_i32_1 = arith.constant 0 : i32
    return %c0_i32, %c0_i32_0 : i32, i32
  }
  func.func @transform_3(%arg0: i32) -> (i32, i32) {
    %c0_i32 = arith.constant 0 : i32
    %c0_i32_0 = arith.constant 0 : i32
    %c0_i32_1 = arith.constant 0 : i32
    return %c0_i32, %c0_i32_0 : i32, i32
  }
  func.func @transform_4(%arg0: i32) -> (i32, i32) {
    %c0_i32 = arith.constant 0 : i32
    %c0_i32_0 = arith.constant 0 : i32
    %c0_i32_1 = arith.constant 0 : i32
    return %c0_i32, %c0_i32_0 : i32, i32
  }
  func.func @transform_5(%arg0: i32) -> (i32, i32) {
    %c0_i32 = arith.constant 0 : i32
    %c0_i32_0 = arith.constant 0 : i32
    %c0_i32_1 = arith.constant 0 : i32
    return %c0_i32, %c0_i32_0 : i32, i32
  }
  func.func @transform_6(%arg0: i32) -> (i32, i32) {
    %c0_i32 = arith.constant 0 : i32
    %c0_i32_0 = arith.constant 0 : i32
    return %arg0, %c0_i32 : i32, i32
  }
  func.func @transform_7(%arg0: i32) -> (i32, i32) {
    %c0_i32 = arith.constant 0 : i32
    %c0_i32_0 = arith.constant 0 : i32
    return %arg0, %c0_i32 : i32, i32
  }
}

module attributes {stable_mosaic.version = 11 : i64} {
  func.func @attention_kernel(%arg0: i32, %arg1: memref<16x8x32xf32, #tpu.memory_space<vmem>>, %arg2: memref<16x32xf32, #tpu.memory_space<vmem>>, %arg3: memref<32x32xf32, #tpu.memory_space<vmem>>, %arg4: memref<32x32xf32, #tpu.memory_space<vmem>>, %arg5: memref<1x32xf32, #tpu.memory_space<vmem>>, %arg6: memref<1x32xf32, #tpu.memory_space<vmem>>, %arg7: memref<16x8xf32, #tpu.memory_space<vmem>>, %arg8: memref<16x32xf32, #tpu.memory_space<vmem>>) attributes {dimension_semantics = [#tpu.dimension_semantics<parallel>], iteration_bounds = array<i64: 1>, scalar_prefetch = 0 : i64, scratch_operands = 0 : i64, tpu.core_type = #tpu.core_type<tc>, window_params = [{transform_indices = @transform_0, window_bounds = array<i64: 16, 8, 32>}, {transform_indices = @transform_1, window_bounds = array<i64: 16, 32>}, {pipeline_mode = #tpu.pipeline_mode<synchronous>, transform_indices = @transform_2, window_bounds = array<i64: 32, 32>}, {pipeline_mode = #tpu.pipeline_mode<synchronous>, transform_indices = @transform_3, window_bounds = array<i64: 32, 32>}, {pipeline_mode = #tpu.pipeline_mode<synchronous>, transform_indices = @transform_4, window_bounds = array<i64: 1, 32>}, {pipeline_mode = #tpu.pipeline_mode<synchronous>, transform_indices = @transform_5, window_bounds = array<i64: 1, 32>}, {transform_indices = @transform_6, window_bounds = array<i64: 16, 8>}, {transform_indices = @transform_7, window_bounds = array<i64: 16, 32>}]} {
    %c0 = arith.constant 0 : index
    %c0_0 = arith.constant 0 : index
    %c0_1 = arith.constant 0 : index
    %0 = vector.load %arg1[%c0, %c0_0, %c0_1] : memref<16x8x32xf32, #tpu.memory_space<vmem>>, vector<16x8x32xf32>
    %c0_2 = arith.constant 0 : index
    %c0_3 = arith.constant 0 : index
    %1 = vector.load %arg2[%c0_2, %c0_3] : memref<16x32xf32, #tpu.memory_space<vmem>>, vector<16x32xf32>
    %2 = vector.shape_cast %0 : vector<16x8x32xf32> to vector<128x32xf32>
    %c0_4 = arith.constant 0 : index
    %c0_5 = arith.constant 0 : index
    %3 = vector.load %arg3[%c0_4, %c0_5] : memref<32x32xf32, #tpu.memory_space<vmem>>, vector<32x32xf32>
    %cst = arith.constant dense<0.000000e+00> : vector<128x32xf32>
    %4 = tpu.matmul %2, %3, %cst {dimension_numbers = #tpu.dot_dimension_numbers<[1], [0], [0], [1], [0, 0, 1, 1], [], []>} : vector<128x32xf32>, vector<32x32xf32>, vector<128x32xf32> -> vector<128x32xf32>
    %5 = vector.shape_cast %4 : vector<128x32xf32> to vector<16x8x32xf32>
    %c0_6 = arith.constant 0 : index
    %c0_7 = arith.constant 0 : index
    %6 = vector.load %arg4[%c0_6, %c0_7] : memref<32x32xf32, #tpu.memory_space<vmem>>, vector<32x32xf32>
    %cst_8 = arith.constant dense<0.000000e+00> : vector<16x32xf32>
    %7 = tpu.matmul %1, %6, %cst_8 {dimension_numbers = #tpu.dot_dimension_numbers<[1], [0], [0], [1], [0, 0, 1, 1], [], []>} : vector<16x32xf32>, vector<32x32xf32>, vector<16x32xf32> -> vector<16x32xf32>
    %c0_9 = arith.constant 0 : index
    %c0_10 = arith.constant 0 : index
    %8 = vector.load %arg5[%c0_9, %c0_10] : memref<1x32xf32, #tpu.memory_space<vmem>>, vector<1x32xf32>
    %9 = vector.broadcast %8 : vector<1x32xf32> to vector<16x32xf32>
    %10 = arith.addf %7, %9 : vector<16x32xf32>
    %11 = vector.shape_cast %10 : vector<16x32xf32> to vector<16x1x32xf32>
    %12 = vector.broadcast %11 : vector<16x1x32xf32> to vector<16x8x32xf32>
    %13 = arith.addf %5, %12 : vector<16x8x32xf32>
    %14 = math.tanh %13 : vector<16x8x32xf32>
    %c0_11 = arith.constant 0 : index
    %c0_12 = arith.constant 0 : index
    %15 = vector.load %arg6[%c0_11, %c0_12] : memref<1x32xf32, #tpu.memory_space<vmem>>, vector<1x32xf32>
    %16 = vector.shape_cast %15 : vector<1x32xf32> to vector<1x1x32xf32>
    %17 = vector.broadcast %16 : vector<1x1x32xf32> to vector<16x8x32xf32>
    %18 = arith.mulf %14, %17 : vector<16x8x32xf32>
    %cst_13 = arith.constant dense<0.000000e+00> : vector<16x8xf32>
    %19 = vector.multi_reduction <add>, %18, %cst_13 [2] : vector<16x8x32xf32> to vector<16x8xf32>
    %cst_14 = arith.constant dense<0xFF800000> : vector<16xf32>
    %20 = vector.multi_reduction <maximumf>, %19, %cst_14 [1] : vector<16x8xf32> to vector<16xf32>
    %21 = vector.shape_cast %20 : vector<16xf32> to vector<16x1xf32>
    %22 = vector.broadcast %21 : vector<16x1xf32> to vector<16x8xf32>
    %23 = arith.subf %19, %22 : vector<16x8xf32>
    %24 = math.exp %23 : vector<16x8xf32>
    %cst_15 = arith.constant dense<0.000000e+00> : vector<16xf32>
    %25 = vector.multi_reduction <add>, %24, %cst_15 [1] : vector<16x8xf32> to vector<16xf32>
    %26 = vector.shape_cast %25 : vector<16xf32> to vector<16x1xf32>
    %27 = tpu.reciprocal %26 {approx = true} : vector<16x1xf32> -> vector<16x1xf32>
    %28 = vector.broadcast %27 : vector<16x1xf32> to vector<16x8xf32>
    %29 = arith.mulf %24, %28 : vector<16x8xf32>
    %c0_16 = arith.constant 0 : index
    %c0_17 = arith.constant 0 : index
    %30 = vector.load %arg7[%c0_16, %c0_17] : memref<16x8xf32, #tpu.memory_space<vmem>>, vector<16x8xf32>
    tpu.vector_store %arg7[%c0_16, %c0_17], %29 {strides = array<i32>} : memref<16x8xf32, #tpu.memory_space<vmem>>, vector<16x8xf32>,
    %31 = vector.shape_cast %29 : vector<16x8xf32> to vector<16x8x1xf32>
    %32 = vector.broadcast %31 : vector<16x8x1xf32> to vector<16x8x32xf32>
    %33 = arith.mulf %0, %32 : vector<16x8x32xf32>
    %cst_18 = arith.constant dense<0.000000e+00> : vector<16x32xf32>
    %34 = vector.multi_reduction <add>, %33, %cst_18 [1] : vector<16x8x32xf32> to vector<16x32xf32>
    %c0_19 = arith.constant 0 : index
    %c0_20 = arith.constant 0 : index
    %35 = vector.load %arg8[%c0_19, %c0_20] : memref<16x32xf32, #tpu.memory_space<vmem>>, vector<16x32xf32>
    tpu.vector_store %arg8[%c0_19, %c0_20], %34 {strides = array<i32>} : memref<16x32xf32, #tpu.memory_space<vmem>>, vector<16x32xf32>,
    return
  }
  func.func @transform_0(%arg0: i32) -> (i32, i32, i32) {
    %c0_i32 = arith.constant 0 : i32
    %c0_i32_0 = arith.constant 0 : i32
    %c0_i32_1 = arith.constant 0 : i32
    return %arg0, %c0_i32, %c0_i32_0 : i32, i32, i32
  }
  func.func @transform_1(%arg0: i32) -> (i32, i32) {
    %c0_i32 = arith.constant 0 : i32
    %c0_i32_0 = arith.constant 0 : i32
    return %arg0, %c0_i32 : i32, i32
  }
  func.func @transform_2(%arg0: i32) -> (i32, i32) {
    %c0_i32 = arith.constant 0 : i32
    %c0_i32_0 = arith.constant 0 : i32
    %c0_i32_1 = arith.constant 0 : i32
    return %c0_i32, %c0_i32_0 : i32, i32
  }
  func.func @transform_3(%arg0: i32) -> (i32, i32) {
    %c0_i32 = arith.constant 0 : i32
    %c0_i32_0 = arith.constant 0 : i32
    %c0_i32_1 = arith.constant 0 : i32
    return %c0_i32, %c0_i32_0 : i32, i32
  }
  func.func @transform_4(%arg0: i32) -> (i32, i32) {
    %c0_i32 = arith.constant 0 : i32
    %c0_i32_0 = arith.constant 0 : i32
    %c0_i32_1 = arith.constant 0 : i32
    return %c0_i32, %c0_i32_0 : i32, i32
  }
  func.func @transform_5(%arg0: i32) -> (i32, i32) {
    %c0_i32 = arith.constant 0 : i32
    %c0_i32_0 = arith.constant 0 : i32
    %c0_i32_1 = arith.constant 0 : i32
    return %c0_i32, %c0_i32_0 : i32, i32
  }
  func.func @transform_6(%arg0: i32) -> (i32, i32) {
    %c0_i32 = arith.constant 0 : i32
    %c0_i32_0 = arith.constant 0 : i32
    return %arg0, %c0_i32 : i32, i32
  }
  func.func @transform_7(%arg0: i32) -> (i32, i32) {
    %c0_i32 = arith.constant 0 : i32
    %c0_i32_0 = arith.constant 0 : i32
    return %arg0, %c0_i32 : i32, i32
  }
}

</mosaic_0001>

<llo_original>
// kernel: tpu_custom_call.1
$region0: #{tpu_custom_call.1}
  #allocation0 [shape = 'u32[]', space=smem, size = 0x4, offset = 0x4, fixed_abs, tag = 'smem constant byte address 0x4 - core index']
  #allocation1 [shape = 'u32[144,128]{1,0:T(1,128)}', space=vmem, size = 0x12000, scoped, tag = 'internal scratch']
  %s0 = inlined_call_operand.hbm [shape: f32[16,8,32], index: 0, kind: input, shape index: {}]
  %s1 = inlined_call_operand.hbm [shape: f32[16,32], index: 1, kind: input, shape index: {}]
  %s2 = inlined_call_operand.hbm [shape: f32[32,32], index: 2, kind: input, shape index: {}]
  %s3 = inlined_call_operand.hbm [shape: f32[32,32], index: 3, kind: input, shape index: {}]
  %s4 = inlined_call_operand.vmem [shape: f32[1,32], index: 4, kind: input, shape index: {}]
  %s5 = inlined_call_operand.vmem [shape: f32[1,32], index: 5, kind: input, shape index: {}]
  %s6 = inlined_call_operand.vmem [shape: f32[16,8], index: 6, kind: output, shape index: {0}]
  %s7 = inlined_call_operand.hbm [shape: f32[16,32], index: 7, kind: output, shape index: {1}]
  %8 = xla_tuple %s6, %s7
  %s9 = sld [smem:[#allocation0]]
  $region58: #{tpu_custom_call.1} parent=0
    _
  %s11 = ssub.s32 1, %s9
  %s12 = scalar_select 0, %s11, %s9
  $region1: #{tpu_custom_call.1} parent=0
    #allocation2 [shape = 'u8[65536]{0}', space=vmem, size = 0x10000, scoped, tag = 'input window, operand 0, single buffered']
    #allocation3 [shape = 's32[1]{0}', space=sflag, size = 0x4, scoped, tag = 'scoped memory for tpu_custom_call.1']
    #allocation4 [shape = 's32[1]{0}', space=sflag, size = 0x4, scoped, tag = 'scoped memory for tpu_custom_call.1']
    #allocation5 [shape = 'u8[8192]{0}', space=vmem, size = 0x2000, scoped, tag = 'input window, operand 1, single buffered']
    #allocation6 [shape = 's32[1]{0}', space=sflag, size = 0x4, scoped, tag = 'scoped memory for tpu_custom_call.1']
    #allocation7 [shape = 'u8[16384]{0}', space=vmem, size = 0x4000, scoped, tag = 'input window, operand 2, single buffered']
    #allocation8 [shape = 'u8[16384]{0}', space=vmem, size = 0x4000, scoped, tag = 'input window, operand 3, single buffered']
    #allocation9 [shape = 's32[1]{0}', space=sflag, size = 0x4, scoped, tag = 'scoped memory for tpu_custom_call.1']
    #allocation10 [shape = 'u8[8192]{0}', space=vmem, size = 0x2000, scoped, tag = 'output window, operand 1, single buffered']
    %13 = vsyncpa [#allocation3], 0
    %14 = vsyncpa [#allocation6], 0
    %15 = vsyncpa [#allocation9], 0
    %16 = vsyncpa [#allocation4], 0
    // Predicated region
    $region2: #{tpu_custom_call.1} parent=1 // pred_check
      _
    $region3: #{tpu_custom_call.1} parent=1 // pred_check_branch
      %18 = sbr.rel (0) target = $region5
    $region4: #{tpu_custom_call.1} parent=1 // pred_region
      %s20 = ssub.s32 2048, 2048
      %21 = vsyncadd [#allocation3], %s20
      %s22 = sshll.u32 [#allocation2], 4
      %s23 = int_to_ptr.vmem [resolvable:$true] %s22
      %28 = dma.hbm_to_vmem [thread:$0]  %s0, 2048, %s23, [#allocation3], 128, 128, 8
    $region5: #{tpu_custom_call.1} parent=1 // pred_fallthru
      _
    // Predicated region
    $region6: #{tpu_custom_call.1} parent=1 // pred_check
      _
    $region7: #{tpu_custom_call.1} parent=1 // pred_check_branch
      %30 = sbr.rel (0) target = $region9
    $region8: #{tpu_custom_call.1} parent=1 // pred_region
      %s32 = ssub.s32 256, 256
      %33 = vsyncadd [#allocation6], %s32
      %s34 = sshll.u32 [#allocation5], 4
      %s35 = int_to_ptr.vmem [resolvable:$true] %s34
      %40 = dma.hbm_to_vmem [thread:$0]  %s1, 256, %s35, [#allocation6], 128, 128, 8
    $region9: #{tpu_custom_call.1} parent=1 // pred_fallthru
      _
    // Predicated region
    $region10: #{tpu_custom_call.1} parent=1 // pred_check
      _
    $region11: #{tpu_custom_call.1} parent=1 // pred_check_branch
      %42 = sbr.rel (0) target = $region13
    $region12: #{tpu_custom_call.1} parent=1 // pred_region
      %s44 = ssub.s32 512, 512
      %45 = vsyncadd [#allocation6], %s44
      %s46 = sshll.u32 [#allocation7], 4
      %s47 = int_to_ptr.vmem [resolvable:$true] %s46
      %52 = dma.hbm_to_vmem [thread:$0]  %s2, 512, %s47, [#allocation6], 128, 128, 8
    $region13: #{tpu_custom_call.1} parent=1 // pred_fallthru
      _
    // Predicated region
    $region14: #{tpu_custom_call.1} parent=1 // pred_check
      _
    $region15: #{tpu_custom_call.1} parent=1 // pred_check_branch
      %54 = sbr.rel (0) target = $region17
    $region16: #{tpu_custom_call.1} parent=1 // pred_region
      %s56 = ssub.s32 512, 512
      %57 = vsyncadd [#allocation9], %s56
      %s58 = sshll.u32 [#allocation8], 4
      %s59 = int_to_ptr.vmem [resolvable:$true] %s58
      %64 = dma.hbm_to_vmem [thread:$0]  %s3, 512, %s59, [#allocation9], 128, 128, 8
    $region17: #{tpu_custom_call.1} parent=1 // pred_fallthru
      _
    // Predicated region
    $region18: #{tpu_custom_call.1} parent=1 // pred_check
      _
    $region19: #{tpu_custom_call.1} parent=1 // pred_check_branch
      %66 = sbr.rel (0) target = $region21
    $region20: #{tpu_custom_call.1} parent=1 // pred_region
      _
    $region21: #{tpu_custom_call.1} parent=1 // pred_fallthru
      _
    // Predicated region
    $region22: #{tpu_custom_call.1} parent=1 // pred_check
      _
    $region23: #{tpu_custom_call.1} parent=1 // pred_check_branch
      %68 = sbr.rel (0) target = $region25
    $region24: #{tpu_custom_call.1} parent=1 // pred_region
      _
    $region25: #{tpu_custom_call.1} parent=1 // pred_fallthru
      _
    // Predicated region
    $region26: #{tpu_custom_call.1} parent=1 // pred_check
      _
    $region27: #{tpu_custom_call.1} parent=1 // pred_check_branch
      %70 = sbr.rel (0) target = $region29
    $region28: #{tpu_custom_call.1} parent=1 // pred_region
      %71 = dma.done [#allocation3], 2048
    $region29: #{tpu_custom_call.1} parent=1 // pred_fallthru
      _
    // Predicated region
    $region30: #{tpu_custom_call.1} parent=1 // pred_check
      _
    $region31: #{tpu_custom_call.1} parent=1 // pred_check_branch
      %73 = sbr.rel (0) target = $region33
    $region32: #{tpu_custom_call.1} parent=1 // pred_region
      %74 = dma.done [#allocation6], 256
    $region33: #{tpu_custom_call.1} parent=1 // pred_fallthru
      _
    // Predicated region
    $region34: #{tpu_custom_call.1} parent=1 // pred_check
      _
    $region35: #{tpu_custom_call.1} parent=1 // pred_check_branch
      %76 = sbr.rel (0) target = $region37
    $region36: #{tpu_custom_call.1} parent=1 // pred_region
      %77 = dma.done [#allocation6], 512
    $region37: #{tpu_custom_call.1} parent=1 // pred_fallthru
      _
    // Predicated region
    $region38: #{tpu_custom_call.1} parent=1 // pred_check
      _
    $region39: #{tpu_custom_call.1} parent=1 // pred_check_branch
      %79 = sbr.rel (0) target = $region41
    $region40: #{tpu_custom_call.1} parent=1 // pred_region
      %80 = dma.done [#allocation9], 512
    $region41: #{tpu_custom_call.1} parent=1 // pred_fallthru
      _
    %v81 = vld [vmem:[#allocation2] sm:$0xff]
    %v82 = vld [vmem:[#allocation2 + $0x8] sm:$0xff]
    %v83 = vld [vmem:[#allocation2 + $0x10] sm:$0xff]
    %v84 = vld [vmem:[#allocation2 + $0x18] sm:$0xff]
    %v85 = vld [vmem:[#allocation2 + $0x20] sm:$0xff]
    %v86 = vld [vmem:[#allocation2 + $0x28] sm:$0xff]
    %v87 = vld [vmem:[#allocation2 + $0x30] sm:$0xff]
    %v88 = vld [vmem:[#allocation2 + $0x38] sm:$0xff]
    %v89 = vld [vmem:[#allocation2 + $0x40] sm:$0xff]
    %v90 = vld [vmem:[#allocation2 + $0x48] sm:$0xff]
    %v91 = vld [vmem:[#allocation2 + $0x50] sm:$0xff]
    %v92 = vld [vmem:[#allocation2 + $0x58] sm:$0xff]
    %v93 = vld [vmem:[#allocation2 + $0x60] sm:$0xff]
    %v94 = vld [vmem:[#allocation2 + $0x68] sm:$0xff]
    %v95 = vld [vmem:[#allocation2 + $0x70] sm:$0xff]
    %v96 = vld [vmem:[#allocation2 + $0x78] sm:$0xff]
    %v97 = vld [vmem:[#allocation5] sm:$0xff]
    %v98 = vld [vmem:[#allocation5 + $0x8] sm:$0xff]
    %v99 = vld [vmem:[#allocation7] sm:$0xff]
    %v100 = vld [vmem:[#allocation7 + $0x8] sm:$0xff]
    %v101 = vld [vmem:[#allocation7 + $0x10] sm:$0xff]
    %v102 = vld [vmem:[#allocation7 + $0x18] sm:$0xff]
    %vm103 = vcmask 261120
    %v105 = vsel %vm103, %v81, 0
    %v108 = vsel %vm103, %v82, 0
    %v111 = vsel %vm103, %v83, 0
    %v114 = vsel %vm103, %v84, 0
    %v117 = vsel %vm103, %v85, 0
    %v120 = vsel %vm103, %v86, 0
    %v123 = vsel %vm103, %v87, 0
    %v126 = vsel %vm103, %v88, 0
    %v129 = vsel %vm103, %v89, 0
    %v132 = vsel %vm103, %v90, 0
    %v135 = vsel %vm103, %v91, 0
    %v138 = vsel %vm103, %v92, 0
    %v141 = vsel %vm103, %v93, 0
    %v144 = vsel %vm103, %v94, 0
    %v147 = vsel %vm103, %v95, 0
    %v150 = vsel %vm103, %v96, 0
    %152 = vmatprep.subr.mxu0 0.0
    %153 = vmatpush1.msra.mxu0 0.0
    %154 = vmatprep.subr.mxu0 0.0
    %155 = vmatpush1.msra.mxu0 0.0
    %156 = vmatprep.subr.mxu0 0.0
    %157 = vmatpush1.msra.mxu0 0.0
    %158 = vmatprep.subr.mxu0 0.0
    %159 = vmatpush1.msra.mxu0 0.0
    %160 = vmatprep.subr.mxu0 0.0
    %161 = vmatpush1.msra.mxu0 0.0
    %162 = vmatprep.subr.mxu0 0.0
    %163 = vmatpush1.msra.mxu0 0.0
    %164 = vmatprep.subr.mxu0 0.0
    %165 = vmatpush1.msra.mxu0 0.0
    %166 = vmatprep.subr.mxu0 0.0
    %167 = vmatpush1.msra.mxu0 0.0
    %168 = vmatprep.subr.mxu0 0.0
    %169 = vmatpush1.msra.mxu0 0.0
    %170 = vmatprep.subr.mxu0 0.0
    %171 = vmatpush1.msra.mxu0 0.0
    %172 = vmatprep.subr.mxu0 0.0
    %173 = vmatpush1.msra.mxu0 0.0
    %174 = vmatprep.subr.mxu0 0.0
    %175 = vmatpush1.msra.mxu0 0.0
    %176 = vmatprep.subr.mxu0 0.0
    %177 = vmatpush1.msra.mxu0 %v102
    %178 = vmatprep.subr.mxu0 0.0
    %179 = vmatpush1.msra.mxu0 %v101
    %180 = vmatprep.subr.mxu0 0.0
    %181 = vmatpush1.msra.mxu0 %v100
    %182 = vmatprep.subr.mxu0 0.0
    %183 = vmatpush1.msra.mxu0 %v99
    %184 = vmatprep.subr.mxu0 0.0
    %185 = vmatpush2.msra.mxu0 0.0
    %186 = vmatprep.subr.mxu0 0.0
    %187 = vmatpush2.msra.mxu0 0.0
    %188 = vmatprep.subr.mxu0 0.0
    %189 = vmatpush2.msra.mxu0 0.0
    %190 = vmatprep.subr.mxu0 0.0
    %191 = vmatpush2.msra.mxu0 0.0
    %192 = vmatprep.subr.mxu0 0.0
    %193 = vmatpush2.msra.mxu0 0.0
    %194 = vmatprep.subr.mxu0 0.0
    %195 = vmatpush2.msra.mxu0 0.0
    %196 = vmatprep.subr.mxu0 0.0
    %197 = vmatpush2.msra.mxu0 0.0
    %198 = vmatprep.subr.mxu0 0.0
    %199 = vmatpush2.msra.mxu0 0.0
    %200 = vmatprep.subr.mxu0 0.0
    %201 = vmatpush2.msra.mxu0 0.0
    %202 = vmatprep.subr.mxu0 0.0
    %203 = vmatpush2.msra.mxu0 0.0
    %204 = vmatprep.subr.mxu0 0.0
    %205 = vmatpush2.msra.mxu0 0.0
    %206 = vmatprep.subr.mxu0 0.0
    %207 = vmatpush2.msra.mxu0 0.0
    %208 = vmatprep.subr.mxu0 0.0
    %209 = vmatpush2.msra.mxu0 0.0
    %210 = vmatprep.subr.mxu0 0.0
    %211 = vmatpush2.msra.mxu0 0.0
    %212 = vmatprep.subr.mxu0 0.0
    %213 = vmatpush2.msra.mxu0 0.0
    %214 = vmatprep.subr.mxu0 0.0
    %215 = vmatpush2.msra.mxu0 0.0
    %216 = vmatprep.mubr.f32.mxu0 0.0
    %217 = vmatmul.mubr.f32.gmra.mxu0 %v105
    %v218 = vpop.f32.mrf.mxu0
    %v219 = vadd.f32 0.0, %v218
    %v220 = vpop.f32.mrf.mxu0
    %221 = vmatprep.mubr.f32.mxu0 0.0
    %222 = vmatmul.mubr.f32.gmra.mxu0 %v108
    %v223 = vpop.f32.mrf.mxu0
    %v224 = vadd.f32 0.0, %v223
    %v225 = vpop.f32.mrf.mxu0
    %226 = vmatprep.mubr.f32.mxu0 0.0
    %227 = vmatmul.mubr.f32.gmra.mxu0 %v111
    %v228 = vpop.f32.mrf.mxu0
    %v229 = vadd.f32 0.0, %v228
    %v230 = vpop.f32.mrf.mxu0
    %231 = vmatprep.mubr.f32.mxu0 0.0
    %232 = vmatmul.mubr.f32.gmra.mxu0 %v114
    %v233 = vpop.f32.mrf.mxu0
    %v234 = vadd.f32 0.0, %v233
    %v235 = vpop.f32.mrf.mxu0
    %236 = vmatprep.mubr.f32.mxu0 0.0
    %237 = vmatmul.mubr.f32.gmra.mxu0 %v117
    %v238 = vpop.f32.mrf.mxu0
    %v239 = vadd.f32 0.0, %v238
    %v240 = vpop.f32.mrf.mxu0
    %241 = vmatprep.mubr.f32.mxu0 0.0
    %242 = vmatmul.mubr.f32.gmra.mxu0 %v120
    %v243 = vpop.f32.mrf.mxu0
    %v244 = vadd.f32 0.0, %v243
    %v245 = vpop.f32.mrf.mxu0
    %246 = vmatprep.mubr.f32.mxu0 0.0
    %247 = vmatmul.mubr.f32.gmra.mxu0 %v123
    %v248 = vpop.f32.mrf.mxu0
    %v249 = vadd.f32 0.0, %v248
    %v250 = vpop.f32.mrf.mxu0
    %251 = vmatprep.mubr.f32.mxu0 0.0
    %252 = vmatmul.mubr.f32.gmra.mxu0 %v126
    %v253 = vpop.f32.mrf.mxu0
    %v254 = vadd.f32 0.0, %v253
    %v255 = vpop.f32.mrf.mxu0
    %256 = vmatprep.mubr.f32.mxu0 0.0
    %257 = vmatmul.mubr.f32.gmra.mxu0 %v129
    %v258 = vpop.f32.mrf.mxu0
    %v259 = vadd.f32 0.0, %v258
    %v260 = vpop.f32.mrf.mxu0
    %261 = vmatprep.mubr.f32.mxu0 0.0
    %262 = vmatmul.mubr.f32.gmra.mxu0 %v132
    %v263 = vpop.f32.mrf.mxu0
    %v264 = vadd.f32 0.0, %v263
    %v265 = vpop.f32.mrf.mxu0
    %266 = vmatprep.mubr.f32.mxu0 0.0
    %267 = vmatmul.mubr.f32.gmra.mxu0 %v135
    %v268 = vpop.f32.mrf.mxu0
    %v269 = vadd.f32 0.0, %v268
    %v270 = vpop.f32.mrf.mxu0
    %271 = vmatprep.mubr.f32.mxu0 0.0
    %272 = vmatmul.mubr.f32.gmra.mxu0 %v138
    %v273 = vpop.f32.mrf.mxu0
    %v274 = vadd.f32 0.0, %v273
    %v275 = vpop.f32.mrf.mxu0
    %276 = vmatprep.mubr.f32.mxu0 0.0
    %277 = vmatmul.mubr.f32.gmra.mxu0 %v141
    %v278 = vpop.f32.mrf.mxu0
    %v279 = vadd.f32 0.0, %v278
    %v280 = vpop.f32.mrf.mxu0
    %281 = vmatprep.mubr.f32.mxu0 0.0
    %282 = vmatmul.mubr.f32.gmra.mxu0 %v144
    %v283 = vpop.f32.mrf.mxu0
    %v284 = vadd.f32 0.0, %v283
    %v285 = vpop.f32.mrf.mxu0
    %286 = vmatprep.mubr.f32.mxu0 0.0
    %287 = vmatmul.mubr.f32.gmra.mxu0 %v147
    %v288 = vpop.f32.mrf.mxu0
    %v289 = vadd.f32 0.0, %v288
    %v290 = vpop.f32.mrf.mxu0
    %291 = vmatprep.mubr.f32.mxu0 0.0
    %292 = vmatmul.mubr.f32.gmra.mxu0 %v150
    %v293 = vpop.f32.mrf.mxu0
    %v294 = vadd.f32 0.0, %v293
    %v295 = vpop.f32.mrf.mxu0
    %296 = vdwg.mxu0
    %v297 = vld [vmem:[#allocation8] sm:$0xff]
    %v298 = vld [vmem:[#allocation8 + $0x8] sm:$0xff]
    %v299 = vld [vmem:[#allocation8 + $0x10] sm:$0xff]
    %v300 = vld [vmem:[#allocation8 + $0x18] sm:$0xff]
    %v301 = vld [vmem:[%s4] sm:$0x1]
    %v303 = vlaneseq
    %v304 = vshrl.u32 %v303, 7
    %v305 = vsub.s32 0, %v304
    %v306 = vrot.slane %v301, %v305
    %v309 = vsel %vm103, %v97, 0
    %v312 = vsel %vm103, %v98, 0
    %314 = vmatprep.subr.mxu0 0.0
    %315 = vmatpush1.msra.mxu0 0.0
    %316 = vmatprep.subr.mxu0 0.0
    %317 = vmatpush1.msra.mxu0 0.0
    %318 = vmatprep.subr.mxu0 0.0
    %319 = vmatpush1.msra.mxu0 0.0
    %320 = vmatprep.subr.mxu0 0.0
    %321 = vmatpush1.msra.mxu0 0.0
    %322 = vmatprep.subr.mxu0 0.0
    %323 = vmatpush1.msra.mxu0 0.0
    %324 = vmatprep.subr.mxu0 0.0
    %325 = vmatpush1.msra.mxu0 0.0
    %326 = vmatprep.subr.mxu0 0.0
    %327 = vmatpush1.msra.mxu0 0.0
    %328 = vmatprep.subr.mxu0 0.0
    %329 = vmatpush1.msra.mxu0 0.0
    %330 = vmatprep.subr.mxu0 0.0
    %331 = vmatpush1.msra.mxu0 0.0
    %332 = vmatprep.subr.mxu0 0.0
    %333 = vmatpush1.msra.mxu0 0.0
    %334 = vmatprep.subr.mxu0 0.0
    %335 = vmatpush1.msra.mxu0 0.0
    %336 = vmatprep.subr.mxu0 0.0
    %337 = vmatpush1.msra.mxu0 0.0
    %338 = vmatprep.subr.mxu0 0.0
    %339 = vmatpush1.msra.mxu0 %v300
    %340 = vmatprep.subr.mxu0 0.0
    %341 = vmatpush1.msra.mxu0 %v299
    %342 = vmatprep.subr.mxu0 0.0
    %343 = vmatpush1.msra.mxu0 %v298
    %344 = vmatprep.subr.mxu0 0.0
    %345 = vmatpush1.msra.mxu0 %v297
    %346 = vmatprep.subr.mxu0 0.0
    %347 = vmatpush2.msra.mxu0 0.0
    %348 = vmatprep.subr.mxu0 0.0
    %349 = vmatpush2.msra.mxu0 0.0
    %350 = vmatprep.subr.mxu0 0.0
    %351 = vmatpush2.msra.mxu0 0.0
    %352 = vmatprep.subr.mxu0 0.0
    %353 = vmatpush2.msra.mxu0 0.0
    %354 = vmatprep.subr.mxu0 0.0
    %355 = vmatpush2.msra.mxu0 0.0
    %356 = vmatprep.subr.mxu0 0.0
    %357 = vmatpush2.msra.mxu0 0.0
    %358 = vmatprep.subr.mxu0 0.0
    %359 = vmatpush2.msra.mxu0 0.0
    %360 = vmatprep.subr.mxu0 0.0
    %361 = vmatpush2.msra.mxu0 0.0
    %362 = vmatprep.subr.mxu0 0.0
    %363 = vmatpush2.msra.mxu0 0.0
    %364 = vmatprep.subr.mxu0 0.0
    %365 = vmatpush2.msra.mxu0 0.0
    %366 = vmatprep.subr.mxu0 0.0
    %367 = vmatpush2.msra.mxu0 0.0
    %368 = vmatprep.subr.mxu0 0.0
    %369 = vmatpush2.msra.mxu0 0.0
    %370 = vmatprep.subr.mxu0 0.0
    %371 = vmatpush2.msra.mxu0 0.0
    %372 = vmatprep.subr.mxu0 0.0
    %373 = vmatpush2.msra.mxu0 0.0
    %374 = vmatprep.subr.mxu0 0.0
    %375 = vmatpush2.msra.mxu0 0.0
    %376 = vmatprep.subr.mxu0 0.0
    %377 = vmatpush2.msra.mxu0 0.0
    %378 = vmatprep.mubr.f32.mxu0 0.0
    %379 = vmatmul.mubr.f32.gmra.mxu0 %v309
    %v380 = vpop.f32.mrf.mxu0
    %v381 = vadd.f32 %v306, %v380
    %v382 = vpop.f32.mrf.mxu0
    %383 = vmatprep.mubr.f32.mxu0 0.0
    %384 = vmatmul.mubr.f32.gmra.mxu0 %v312
    %v385 = vpop.f32.mrf.mxu0
    %v386 = vadd.f32 %v306, %v385
    %v387 = vpop.f32.mrf.mxu0
    %388 = vdwg.mxu0
    %v391 = vcombine.high %v381, %v381
    %v393 = vunpack.c.l.s4 1966171168
    %v394 = vunpack.c.0.s8 %v393
    %v395 = vlaneseq
    %v396 = vshrl.u32 %v395, 7
    %v397 = vsub.s32 %v394, %v396
    %v398 = vrot.slane %v381, %v397
    %v400 = vunpack.c.l.s4 1966171168
    %v401 = vunpack.c.0.s8 %v400
    %v402 = vlaneseq
    %v403 = vshrl.u32 %v402, 7
    %v404 = vsub.s32 %v401, %v403
    %v405 = vrot.slane %v391, %v404
    %v406 = vcombine.high %v398, %v398
    %v407 = vcombine.high %v405, %v405
    %v409 = vunpack.c.l.s4 1966171168
    %v410 = vunpack.c.0.s8 %v409
    %v411 = vlaneseq
    %v412 = vshrl.u32 %v411, 7
    %v413 = vsub.s32 %v410, %v412
    %v414 = vrot.slane %v398, %v413
    %v416 = vunpack.c.l.s4 1966171168
    %v417 = vunpack.c.0.s8 %v416
    %v418 = vlaneseq
    %v419 = vshrl.u32 %v418, 7
    %v420 = vsub.s32 %v417, %v419
    %v421 = vrot.slane %v405, %v420
    %v423 = vunpack.c.l.s4 1966171168
    %v424 = vunpack.c.0.s8 %v423
    %v425 = vlaneseq
    %v426 = vshrl.u32 %v425, 7
    %v427 = vsub.s32 %v424, %v426
    %v428 = vrot.slane %v406, %v427
    %v430 = vunpack.c.l.s4 1966171168
    %v431 = vunpack.c.0.s8 %v430
    %v432 = vlaneseq
    %v433 = vshrl.u32 %v432, 7
    %v434 = vsub.s32 %v431, %v433
    %v435 = vrot.slane %v407, %v434
    %v436 = vcombine.high %v414, %v414
    %v437 = vcombine.high %v421, %v421
    %v438 = vcombine.high %v428, %v428
    %v439 = vcombine.high %v435, %v435
    %v440 = vcombine.high %v386, %v386
    %v442 = vunpack.c.l.s4 1966171168
    %v443 = vunpack.c.0.s8 %v442
    %v444 = vlaneseq
    %v445 = vshrl.u32 %v444, 7
    %v446 = vsub.s32 %v443, %v445
    %v447 = vrot.slane %v386, %v446
    %v449 = vunpack.c.l.s4 1966171168
    %v450 = vunpack.c.0.s8 %v449
    %v451 = vlaneseq
    %v452 = vshrl.u32 %v451, 7
    %v453 = vsub.s32 %v450, %v452
    %v454 = vrot.slane %v440, %v453
    %v455 = vcombine.high %v447, %v447
    %v456 = vcombine.high %v454, %v454
    %v458 = vunpack.c.l.s4 1966171168
    %v459 = vunpack.c.0.s8 %v458
    %v460 = vlaneseq
    %v461 = vshrl.u32 %v460, 7
    %v462 = vsub.s32 %v459, %v461
    %v463 = vrot.slane %v447, %v462
    %v465 = vunpack.c.l.s4 1966171168
    %v466 = vunpack.c.0.s8 %v465
    %v467 = vlaneseq
    %v468 = vshrl.u32 %v467, 7
    %v469 = vsub.s32 %v466, %v468
    %v470 = vrot.slane %v454, %v469
    %v472 = vunpack.c.l.s4 1966171168
    %v473 = vunpack.c.0.s8 %v472
    %v474 = vlaneseq
    %v475 = vshrl.u32 %v474, 7
    %v476 = vsub.s32 %v473, %v475
    %v477 = vrot.slane %v455, %v476
    %v479 = vunpack.c.l.s4 1966171168
    %v480 = vunpack.c.0.s8 %v479
    %v481 = vlaneseq
    %v482 = vshrl.u32 %v481, 7
    %v483 = vsub.s32 %v480, %v482
    %v484 = vrot.slane %v456, %v483
    %v485 = vcombine.high %v463, %v463
    %v486 = vcombine.high %v470, %v470
    %v487 = vcombine.high %v477, %v477
    %v488 = vcombine.high %v484, %v484
    %v489 = vlaneseq
    %v490 = vshrl.u32 %v489, 7
    %v491 = vsub.s32 0, %v490
    %v492 = vrot.slane %v414, %v491
    %v493 = vlaneseq
    %v494 = vshrl.u32 %v493, 7
    %v495 = vsub.s32 0, %v494
    %v496 = vrot.slane %v428, %v495
    %v497 = vlaneseq
    %v498 = vshrl.u32 %v497, 7
    %v499 = vsub.s32 0, %v498
    %v500 = vrot.slane %v436, %v499
    %v501 = vlaneseq
    %v502 = vshrl.u32 %v501, 7
    %v503 = vsub.s32 0, %v502
    %v504 = vrot.slane %v438, %v503
    %v505 = vlaneseq
    %v506 = vshrl.u32 %v505, 7
    %v507 = vsub.s32 0, %v506
    %v508 = vrot.slane %v421, %v507
    %v509 = vlaneseq
    %v510 = vshrl.u32 %v509, 7
    %v511 = vsub.s32 0, %v510
    %v512 = vrot.slane %v435, %v511
    %v513 = vlaneseq
    %v514 = vshrl.u32 %v513, 7
    %v515 = vsub.s32 0, %v514
    %v516 = vrot.slane %v437, %v515
    %v517 = vlaneseq
    %v518 = vshrl.u32 %v517, 7
    %v519 = vsub.s32 0, %v518
    %v520 = vrot.slane %v439, %v519
    %v521 = vlaneseq
    %v522 = vshrl.u32 %v521, 7
    %v523 = vsub.s32 0, %v522
    %v524 = vrot.slane %v463, %v523
    %v525 = vlaneseq
    %v526 = vshrl.u32 %v525, 7
    %v527 = vsub.s32 0, %v526
    %v528 = vrot.slane %v477, %v527
    %v529 = vlaneseq
    %v530 = vshrl.u32 %v529, 7
    %v531 = vsub.s32 0, %v530
    %v532 = vrot.slane %v485, %v531
    %v533 = vlaneseq
    %v534 = vshrl.u32 %v533, 7
    %v535 = vsub.s32 0, %v534
    %v536 = vrot.slane %v487, %v535
    %v537 = vlaneseq
    %v538 = vshrl.u32 %v537, 7
    %v539 = vsub.s32 0, %v538
    %v540 = vrot.slane %v470, %v539
    %v541 = vlaneseq
    %v542 = vshrl.u32 %v541, 7
    %v543 = vsub.s32 0, %v542
    %v544 = vrot.slane %v484, %v543
    %v545 = vlaneseq
    %v546 = vshrl.u32 %v545, 7
    %v547 = vsub.s32 0, %v546
    %v548 = vrot.slane %v486, %v547
    %v549 = vlaneseq
    %v550 = vshrl.u32 %v549, 7
    %v551 = vsub.s32 0, %v550
    %v552 = vrot.slane %v488, %v551
    %v569 = vadd.f32 %v219, %v492
    %v570 = vadd.f32 %v224, %v496
    %v571 = vadd.f32 %v229, %v500
    %v572 = vadd.f32 %v234, %v504
    %v573 = vadd.f32 %v239, %v508
    %v574 = vadd.f32 %v244, %v512
    %v575 = vadd.f32 %v249, %v516
    %v576 = vadd.f32 %v254, %v520
    %v577 = vadd.f32 %v259, %v524
    %v578 = vadd.f32 %v264, %v528
    %v579 = vadd.f32 %v269, %v532
    %v580 = vadd.f32 %v274, %v536
    %v581 = vadd.f32 %v279, %v540
    %v582 = vadd.f32 %v284, %v544
    %v583 = vadd.f32 %v289, %v548
    %v584 = vadd.f32 %v294, %v552
    %v585 = vtanh.pop %v569
    %v586 = vtanh.pop %v570
    %v587 = vtanh.pop %v571
    %v588 = vtanh.pop %v572
    %v589 = vtanh.pop %v573
    %v590 = vtanh.pop %v574
    %v591 = vtanh.pop %v575
    %v592 = vtanh.pop %v576
    %v593 = vtanh.pop %v577
    %v594 = vtanh.pop %v578
    %v595 = vtanh.pop %v579
    %v596 = vtanh.pop %v580
    %v597 = vtanh.pop %v581
    %v598 = vtanh.pop %v582
    %v599 = vtanh.pop %v583
    %v600 = vtanh.pop %v584
    %v601 = vld [vmem:[%s5] sm:$0x1]
    %v603 = vlaneseq
    %v604 = vshrl.u32 %v603, 7
    %v605 = vsub.s32 0, %v604
    %v606 = vrot.slane %v601, %v605
    %v608 = vmul.f32 %v585, %v606
    %v609 = vmul.f32 %v586, %v606
    %v610 = vmul.f32 %v587, %v606
    %v611 = vmul.f32 %v588, %v606
    %v612 = vmul.f32 %v589, %v606
    %v613 = vmul.f32 %v590, %v606
    %v614 = vmul.f32 %v591, %v606
    %v615 = vmul.f32 %v592, %v606
    %v616 = vmul.f32 %v593, %v606
    %v617 = vmul.f32 %v594, %v606
    %v618 = vmul.f32 %v595, %v606
    %v619 = vmul.f32 %v596, %v606
    %v620 = vmul.f32 %v597, %v606
    %v621 = vmul.f32 %v598, %v606
    %v622 = vmul.f32 %v599, %v606
    %v623 = vmul.f32 %v600, %v606
    %v624 = vsel %vm103, %v608, 0.0
    %625 = vadd.xlane.f32.xlu0 %v624
    %v626 = vpop.xlane.xlu0 %625
    %v627 = vsel %vm103, %v609, 0.0
    %628 = vadd.xlane.f32.xlu0 %v627
    %v629 = vpop.xlane.xlu0 %628
    %v630 = vsel %vm103, %v610, 0.0
    %631 = vadd.xlane.f32.xlu0 %v630
    %v632 = vpop.xlane.xlu0 %631
    %v633 = vsel %vm103, %v611, 0.0
    %634 = vadd.xlane.f32.xlu0 %v633
    %v635 = vpop.xlane.xlu0 %634
    %v636 = vsel %vm103, %v612, 0.0
    %637 = vadd.xlane.f32.xlu0 %v636
    %v638 = vpop.xlane.xlu0 %637
    %v639 = vsel %vm103, %v613, 0.0
    %640 = vadd.xlane.f32.xlu0 %v639
    %v641 = vpop.xlane.xlu0 %640
    %v642 = vsel %vm103, %v614, 0.0
    %643 = vadd.xlane.f32.xlu0 %v642
    %v644 = vpop.xlane.xlu0 %643
    %v645 = vsel %vm103, %v615, 0.0
    %646 = vadd.xlane.f32.xlu0 %v645
    %v647 = vpop.xlane.xlu0 %646
    %v648 = vsel %vm103, %v616, 0.0
    %649 = vadd.xlane.f32.xlu0 %v648
    %v650 = vpop.xlane.xlu0 %649
    %v651 = vsel %vm103, %v617, 0.0
    %652 = vadd.xlane.f32.xlu0 %v651
    %v653 = vpop.xlane.xlu0 %652
    %v654 = vsel %vm103, %v618, 0.0
    %655 = vadd.xlane.f32.xlu0 %v654
    %v656 = vpop.xlane.xlu0 %655
    %v657 = vsel %vm103, %v619, 0.0
    %658 = vadd.xlane.f32.xlu0 %v657
    %v659 = vpop.xlane.xlu0 %658
    %v660 = vsel %vm103, %v620, 0.0
    %661 = vadd.xlane.f32.xlu0 %v660
    %v662 = vpop.xlane.xlu0 %661
    %v663 = vsel %vm103, %v621, 0.0
    %664 = vadd.xlane.f32.xlu0 %v663
    %v665 = vpop.xlane.xlu0 %664
    %v666 = vsel %vm103, %v622, 0.0
    %667 = vadd.xlane.f32.xlu0 %v666
    %v668 = vpop.xlane.xlu0 %667
    %v669 = vsel %vm103, %v623, 0.0
    %670 = vadd.xlane.f32.xlu0 %v669
    %v671 = vpop.xlane.xlu0 %670
    %v688 = vlaneseq
    %v689 = vand.u32 %v688, 127
    %v690 = vlaneseq
    %v691 = vshrl.u32 %v690, 7
    %v692 = vsub.s32 %v689, %v691
    %v693 = vrot.slane %v626, %v692
    %v694 = vlaneseq
    %v695 = vshrl.u32 %v694, 7
    %v696 = vsub.s32 %v689, %v695
    %v697 = vrot.slane %v629, %v696
    %v698 = vlaneseq
    %v699 = vshrl.u32 %v698, 7
    %v700 = vsub.s32 %v689, %v699
    %v701 = vrot.slane %v632, %v700
    %v702 = vlaneseq
    %v703 = vshrl.u32 %v702, 7
    %v704 = vsub.s32 %v689, %v703
    %v705 = vrot.slane %v635, %v704
    %v706 = vlaneseq
    %v707 = vshrl.u32 %v706, 7
    %v708 = vsub.s32 %v689, %v707
    %v709 = vrot.slane %v638, %v708
    %v710 = vlaneseq
    %v711 = vshrl.u32 %v710, 7
    %v712 = vsub.s32 %v689, %v711
    %v713 = vrot.slane %v641, %v712
    %v714 = vlaneseq
    %v715 = vshrl.u32 %v714, 7
    %v716 = vsub.s32 %v689, %v715
    %v717 = vrot.slane %v644, %v716
    %v718 = vlaneseq
    %v719 = vshrl.u32 %v718, 7
    %v720 = vsub.s32 %v689, %v719
    %v721 = vrot.slane %v647, %v720
    %v722 = vlaneseq
    %v723 = vshrl.u32 %v722, 7
    %v724 = vsub.s32 %v689, %v723
    %v725 = vrot.slane %v650, %v724
    %v726 = vlaneseq
    %v727 = vshrl.u32 %v726, 7
    %v728 = vsub.s32 %v689, %v727
    %v729 = vrot.slane %v653, %v728
    %v730 = vlaneseq
    %v731 = vshrl.u32 %v730, 7
    %v732 = vsub.s32 %v689, %v731
    %v733 = vrot.slane %v656, %v732
    %v734 = vlaneseq
    %v735 = vshrl.u32 %v734, 7
    %v736 = vsub.s32 %v689, %v735
    %v737 = vrot.slane %v659, %v736
    %v738 = vlaneseq
    %v739 = vshrl.u32 %v738, 7
    %v740 = vsub.s32 %v689, %v739
    %v741 = vrot.slane %v662, %v740
    %v742 = vlaneseq
    %v743 = vshrl.u32 %v742, 7
    %v744 = vsub.s32 %v689, %v743
    %v745 = vrot.slane %v665, %v744
    %v746 = vlaneseq
    %v747 = vshrl.u32 %v746, 7
    %v748 = vsub.s32 %v689, %v747
    %v749 = vrot.slane %v668, %v748
    %v750 = vlaneseq
    %v751 = vshrl.u32 %v750, 7
    %v752 = vsub.s32 %v689, %v751
    %v753 = vrot.slane %v671, %v752
    %vm754 = vcmask 1041409
    %v755 = vsel %vm754, %v697, %v693
    %vm756 = vcmask 1042434
    %v757 = vsel %vm756, %v701, %v755
    %vm758 = vcmask 1043459
    %v759 = vsel %vm758, %v705, %v757
    %vm760 = vcmask 1044484
    %v761 = vsel %vm760, %v709, %v759
    %vm762 = vcmask 1045509
    %v763 = vsel %vm762, %v713, %v761
    %vm764 = vcmask 1046534
    %v765 = vsel %vm764, %v717, %v763
    %vm766 = vcmask 1047559
    %v767 = vsel %vm766, %v721, %v765
    %v768 = vsel %vm754, %v729, %v725
    %v769 = vsel %vm756, %v733, %v768
    %v770 = vsel %vm758, %v737, %v769
    %v771 = vsel %vm760, %v741, %v770
    %v772 = vsel %vm762, %v745, %v771
    %v773 = vsel %vm764, %v749, %v772
    %v774 = vsel %vm766, %v753, %v773
    %vm777 = vcmask 64512
    %v778 = vsel %vm777, %v767, -inf
    %779 = vmax.xlane.f32.xlu0 %v778
    %v780 = vpop.xlane.xlu0 %779
    %v781 = vsel %vm777, %v774, -inf
    %782 = vmax.xlane.f32.xlu0 %v781
    %v783 = vpop.xlane.xlu0 %782
    %v786 = vlaneseq
    %v787 = vshrl.u32 %v786, 7
    %v788 = vsub.s32 0, %v787
    %v789 = vrot.slane %v780, %v788
    %v790 = vlaneseq
    %v791 = vshrl.u32 %v790, 7
    %v792 = vsub.s32 1, %v791
    %v793 = vrot.slane %v780, %v792
    %v794 = vlaneseq
    %v795 = vshrl.u32 %v794, 7
    %v796 = vsub.s32 2, %v795
    %v797 = vrot.slane %v780, %v796
    %v798 = vlaneseq
    %v799 = vshrl.u32 %v798, 7
    %v800 = vsub.s32 3, %v799
    %v801 = vrot.slane %v780, %v800
    %v802 = vlaneseq
    %v803 = vshrl.u32 %v802, 7
    %v804 = vsub.s32 4, %v803
    %v805 = vrot.slane %v780, %v804
    %v806 = vlaneseq
    %v807 = vshrl.u32 %v806, 7
    %v808 = vsub.s32 5, %v807
    %v809 = vrot.slane %v780, %v808
    %v810 = vlaneseq
    %v811 = vshrl.u32 %v810, 7
    %v812 = vsub.s32 6, %v811
    %v813 = vrot.slane %v780, %v812
    %v814 = vlaneseq
    %v815 = vshrl.u32 %v814, 7
    %v816 = vsub.s32 7, %v815
    %v817 = vrot.slane %v780, %v816
    %v818 = vlaneseq
    %v819 = vshrl.u32 %v818, 7
    %v820 = vsub.s32 0, %v819
    %v821 = vrot.slane %v783, %v820
    %v822 = vlaneseq
    %v823 = vshrl.u32 %v822, 7
    %v824 = vsub.s32 1, %v823
    %v825 = vrot.slane %v783, %v824
    %v826 = vlaneseq
    %v827 = vshrl.u32 %v826, 7
    %v828 = vsub.s32 2, %v827
    %v829 = vrot.slane %v783, %v828
    %v830 = vlaneseq
    %v831 = vshrl.u32 %v830, 7
    %v832 = vsub.s32 3, %v831
    %v833 = vrot.slane %v783, %v832
    %v834 = vlaneseq
    %v835 = vshrl.u32 %v834, 7
    %v836 = vsub.s32 4, %v835
    %v837 = vrot.slane %v783, %v836
    %v838 = vlaneseq
    %v839 = vshrl.u32 %v838, 7
    %v840 = vsub.s32 5, %v839
    %v841 = vrot.slane %v783, %v840
    %v842 = vlaneseq
    %v843 = vshrl.u32 %v842, 7
    %v844 = vsub.s32 6, %v843
    %v845 = vrot.slane %v783, %v844
    %v846 = vlaneseq
    %v847 = vshrl.u32 %v846, 7
    %v848 = vsub.s32 7, %v847
    %v849 = vrot.slane %v783, %v848
    %v866 = vsub.f32 %v626, %v789
    %v867 = vsub.f32 %v629, %v793
    %v868 = vsub.f32 %v632, %v797
    %v869 = vsub.f32 %v635, %v801
    %v870 = vsub.f32 %v638, %v805
    %v871 = vsub.f32 %v641, %v809
    %v872 = vsub.f32 %v644, %v813
    %v873 = vsub.f32 %v647, %v817
    %v874 = vsub.f32 %v650, %v821
    %v875 = vsub.f32 %v653, %v825
    %v876 = vsub.f32 %v656, %v829
    %v877 = vsub.f32 %v659, %v833
    %v878 = vsub.f32 %v662, %v837
    %v879 = vsub.f32 %v665, %v841
    %v880 = vsub.f32 %v668, %v845
    %v881 = vsub.f32 %v671, %v849
    %v882 = vmul.f32 %v866, 1.442695
    %v883 = vpow.pop %v882
    %v884 = vmul.f32 %v867, 1.442695
    %v885 = vpow.pop %v884
    %v886 = vmul.f32 %v868, 1.442695
    %v887 = vpow.pop %v886
    %v888 = vmul.f32 %v869, 1.442695
    %v889 = vpow.pop %v888
    %v890 = vmul.f32 %v870, 1.442695
    %v891 = vpow.pop %v890
    %v892 = vmul.f32 %v871, 1.442695
    %v893 = vpow.pop %v892
    %v894 = vmul.f32 %v872, 1.442695
    %v895 = vpow.pop %v894
    %v896 = vmul.f32 %v873, 1.442695
    %v897 = vpow.pop %v896
    %v898 = vmul.f32 %v874, 1.442695
    %v899 = vpow.pop %v898
    %v900 = vmul.f32 %v875, 1.442695
    %v901 = vpow.pop %v900
    %v902 = vmul.f32 %v876, 1.442695
    %v903 = vpow.pop %v902
    %v904 = vmul.f32 %v877, 1.442695
    %v905 = vpow.pop %v904
    %v906 = vmul.f32 %v878, 1.442695
    %v907 = vpow.pop %v906
    %v908 = vmul.f32 %v879, 1.442695
    %v909 = vpow.pop %v908
    %v910 = vmul.f32 %v880, 1.442695
    %v911 = vpow.pop %v910
    %v912 = vmul.f32 %v881, 1.442695
    %v913 = vpow.pop %v912
    %930 = vset.pattern.permute.xlu0 0
    %931 = vperm.xlu0 %930, %v883
    %v932 = vpop.permute.xlu0 %931
    %933 = vset.pattern.permute.xlu0 0
    %934 = vperm.xlu0 %933, %v885
    %v935 = vpop.permute.xlu0 %934
    %936 = vset.pattern.permute.xlu0 0
    %937 = vperm.xlu0 %936, %v887
    %v938 = vpop.permute.xlu0 %937
    %939 = vset.pattern.permute.xlu0 0
    %940 = vperm.xlu0 %939, %v889
    %v941 = vpop.permute.xlu0 %940
    %942 = vset.pattern.permute.xlu0 0
    %943 = vperm.xlu0 %942, %v891
    %v944 = vpop.permute.xlu0 %943
    %945 = vset.pattern.permute.xlu0 0
    %946 = vperm.xlu0 %945, %v893
    %v947 = vpop.permute.xlu0 %946
    %948 = vset.pattern.permute.xlu0 0
    %949 = vperm.xlu0 %948, %v895
    %v950 = vpop.permute.xlu0 %949
    %951 = vset.pattern.permute.xlu0 0
    %952 = vperm.xlu0 %951, %v897
    %v953 = vpop.permute.xlu0 %952
    %954 = vset.pattern.permute.xlu0 0
    %955 = vperm.xlu0 %954, %v899
    %v956 = vpop.permute.xlu0 %955
    %957 = vset.pattern.permute.xlu0 0
    %958 = vperm.xlu0 %957, %v901
    %v959 = vpop.permute.xlu0 %958
    %960 = vset.pattern.permute.xlu0 0
    %961 = vperm.xlu0 %960, %v903
    %v962 = vpop.permute.xlu0 %961
    %963 = vset.pattern.permute.xlu0 0
    %964 = vperm.xlu0 %963, %v905
    %v965 = vpop.permute.xlu0 %964
    %966 = vset.pattern.permute.xlu0 0
    %967 = vperm.xlu0 %966, %v907
    %v968 = vpop.permute.xlu0 %967
    %969 = vset.pattern.permute.xlu0 0
    %970 = vperm.xlu0 %969, %v909
    %v971 = vpop.permute.xlu0 %970
    %972 = vset.pattern.permute.xlu0 0
    %973 = vperm.xlu0 %972, %v911
    %v974 = vpop.permute.xlu0 %973
    %975 = vset.pattern.permute.xlu0 0
    %976 = vperm.xlu0 %975, %v913
    %v977 = vpop.permute.xlu0 %976
    %v978 = vlaneseq
    %v979 = vshrl.u32 %v978, 7
    %v980 = vsub.s32 %v689, %v979
    %v981 = vrot.slane %v932, %v980
    %v982 = vlaneseq
    %v983 = vshrl.u32 %v982, 7
    %v984 = vsub.s32 %v689, %v983
    %v985 = vrot.slane %v935, %v984
    %v986 = vlaneseq
    %v987 = vshrl.u32 %v986, 7
    %v988 = vsub.s32 %v689, %v987
    %v989 = vrot.slane %v938, %v988
    %v990 = vlaneseq
    %v991 = vshrl.u32 %v990, 7
    %v992 = vsub.s32 %v689, %v991
    %v993 = vrot.slane %v941, %v992
    %v994 = vlaneseq
    %v995 = vshrl.u32 %v994, 7
    %v996 = vsub.s32 %v689, %v995
    %v997 = vrot.slane %v944, %v996
    %v998 = vlaneseq
    %v999 = vshrl.u32 %v998, 7
    %v1000 = vsub.s32 %v689, %v999
    %v1001 = vrot.slane %v947, %v1000
    %v1002 = vlaneseq
    %v1003 = vshrl.u32 %v1002, 7
    %v1004 = vsub.s32 %v689, %v1003
    %v1005 = vrot.slane %v950, %v1004
    %v1006 = vlaneseq
    %v1007 = vshrl.u32 %v1006, 7
    %v1008 = vsub.s32 %v689, %v1007
    %v1009 = vrot.slane %v953, %v1008
    %v1010 = vlaneseq
    %v1011 = vshrl.u32 %v1010, 7
    %v1012 = vsub.s32 %v689, %v1011
    %v1013 = vrot.slane %v956, %v1012
    %v1014 = vlaneseq
    %v1015 = vshrl.u32 %v1014, 7
    %v1016 = vsub.s32 %v689, %v1015
    %v1017 = vrot.slane %v959, %v1016
    %v1018 = vlaneseq
    %v1019 = vshrl.u32 %v1018, 7
    %v1020 = vsub.s32 %v689, %v1019
    %v1021 = vrot.slane %v962, %v1020
    %v1022 = vlaneseq
    %v1023 = vshrl.u32 %v1022, 7
    %v1024 = vsub.s32 %v689, %v1023
    %v1025 = vrot.slane %v965, %v1024
    %v1026 = vlaneseq
    %v1027 = vshrl.u32 %v1026, 7
    %v1028 = vsub.s32 %v689, %v1027
    %v1029 = vrot.slane %v968, %v1028
    %v1030 = vlaneseq
    %v1031 = vshrl.u32 %v1030, 7
    %v1032 = vsub.s32 %v689, %v1031
    %v1033 = vrot.slane %v971, %v1032
    %v1034 = vlaneseq
    %v1035 = vshrl.u32 %v1034, 7
    %v1036 = vsub.s32 %v689, %v1035
    %v1037 = vrot.slane %v974, %v1036
    %v1038 = vlaneseq
    %v1039 = vshrl.u32 %v1038, 7
    %v1040 = vsub.s32 %v689, %v1039
    %v1041 = vrot.slane %v977, %v1040
    %v1042 = vsel %vm754, %v985, %v981
    %v1043 = vsel %vm756, %v989, %v1042
    %v1044 = vsel %vm758, %v993, %v1043
    %v1045 = vsel %vm760, %v997, %v1044
    %v1046 = vsel %vm762, %v1001, %v1045
    %v1047 = vsel %vm764, %v1005, %v1046
    %v1048 = vsel %vm766, %v1009, %v1047
    %v1049 = vsel %vm754, %v1017, %v1013
    %v1050 = vsel %vm756, %v1021, %v1049
    %v1051 = vsel %vm758, %v1025, %v1050
    %v1052 = vsel %vm760, %v1029, %v1051
    %v1053 = vsel %vm762, %v1033, %v1052
    %v1054 = vsel %vm764, %v1037, %v1053
    %v1055 = vsel %vm766, %v1041, %v1054
    %v1058 = vsel %vm777, %v1048, 0.0
    %1059 = vadd.xlane.f32.xlu0 %v1058
    %v1060 = vpop.xlane.xlu0 %1059
    %v1061 = vsel %vm777, %v1055, 0.0
    %1062 = vadd.xlane.f32.xlu0 %v1061
    %v1063 = vpop.xlane.xlu0 %1062
    %v1064 = vrcp.pop %v1060
    %v1065 = vrcp.pop %v1063
    %v1068 = vlaneseq
    %v1069 = vshrl.u32 %v1068, 7
    %v1070 = vsub.s32 0, %v1069
    %v1071 = vrot.slane %v1064, %v1070
    %v1072 = vlaneseq
    %v1073 = vshrl.u32 %v1072, 7
    %v1074 = vsub.s32 1, %v1073
    %v1075 = vrot.slane %v1064, %v1074
    %v1076 = vlaneseq
    %v1077 = vshrl.u32 %v1076, 7
    %v1078 = vsub.s32 2, %v1077
    %v1079 = vrot.slane %v1064, %v1078
    %v1080 = vlaneseq
    %v1081 = vshrl.u32 %v1080, 7
    %v1082 = vsub.s32 3, %v1081
    %v1083 = vrot.slane %v1064, %v1082
    %v1084 = vlaneseq
    %v1085 = vshrl.u32 %v1084, 7
    %v1086 = vsub.s32 4, %v1085
    %v1087 = vrot.slane %v1064, %v1086
    %v1088 = vlaneseq
    %v1089 = vshrl.u32 %v1088, 7
    %v1090 = vsub.s32 5, %v1089
    %v1091 = vrot.slane %v1064, %v1090
    %v1092 = vlaneseq
    %v1093 = vshrl.u32 %v1092, 7
    %v1094 = vsub.s32 6, %v1093
    %v1095 = vrot.slane %v1064, %v1094
    %v1096 = vlaneseq
    %v1097 = vshrl.u32 %v1096, 7
    %v1098 = vsub.s32 7, %v1097
    %v1099 = vrot.slane %v1064, %v1098
    %v1100 = vlaneseq
    %v1101 = vshrl.u32 %v1100, 7
    %v1102 = vsub.s32 0, %v1101
    %v1103 = vrot.slane %v1065, %v1102
    %v1104 = vlaneseq
    %v1105 = vshrl.u32 %v1104, 7
    %v1106 = vsub.s32 1, %v1105
    %v1107 = vrot.slane %v1065, %v1106
    %v1108 = vlaneseq
    %v1109 = vshrl.u32 %v1108, 7
    %v1110 = vsub.s32 2, %v1109
    %v1111 = vrot.slane %v1065, %v1110
    %v1112 = vlaneseq
    %v1113 = vshrl.u32 %v1112, 7
    %v1114 = vsub.s32 3, %v1113
    %v1115 = vrot.slane %v1065, %v1114
    %v1116 = vlaneseq
    %v1117 = vshrl.u32 %v1116, 7
    %v1118 = vsub.s32 4, %v1117
    %v1119 = vrot.slane %v1065, %v1118
    %v1120 = vlaneseq
    %v1121 = vshrl.u32 %v1120, 7
    %v1122 = vsub.s32 5, %v1121
    %v1123 = vrot.slane %v1065, %v1122
    %v1124 = vlaneseq
    %v1125 = vshrl.u32 %v1124, 7
    %v1126 = vsub.s32 6, %v1125
    %v1127 = vrot.slane %v1065, %v1126
    %v1128 = vlaneseq
    %v1129 = vshrl.u32 %v1128, 7
    %v1130 = vsub.s32 7, %v1129
    %v1131 = vrot.slane %v1065, %v1130
    %v1148 = vmul.f32 %v883, %v1071
    %v1149 = vmul.f32 %v885, %v1075
    %v1150 = vmul.f32 %v887, %v1079
    %v1151 = vmul.f32 %v889, %v1083
    %v1152 = vmul.f32 %v891, %v1087
    %v1153 = vmul.f32 %v893, %v1091
    %v1154 = vmul.f32 %v895, %v1095
    %v1155 = vmul.f32 %v897, %v1099
    %v1156 = vmul.f32 %v899, %v1103
    %v1157 = vmul.f32 %v901, %v1107
    %v1158 = vmul.f32 %v903, %v1111
    %v1159 = vmul.f32 %v905, %v1115
    %v1160 = vmul.f32 %v907, %v1119
    %v1161 = vmul.f32 %v909, %v1123
    %v1162 = vmul.f32 %v911, %v1127
    %v1163 = vmul.f32 %v913, %v1131
    %1180 = vset.pattern.permute.xlu0 0
    %1181 = vperm.xlu0 %1180, %v1148
    %v1182 = vpop.permute.xlu0 %1181
    %1183 = vset.pattern.permute.xlu0 0
    %1184 = vperm.xlu0 %1183, %v1149
    %v1185 = vpop.permute.xlu0 %1184
    %1186 = vset.pattern.permute.xlu0 0
    %1187 = vperm.xlu0 %1186, %v1150
    %v1188 = vpop.permute.xlu0 %1187
    %1189 = vset.pattern.permute.xlu0 0
    %1190 = vperm.xlu0 %1189, %v1151
    %v1191 = vpop.permute.xlu0 %1190
    %1192 = vset.pattern.permute.xlu0 0
    %1193 = vperm.xlu0 %1192, %v1152
    %v1194 = vpop.permute.xlu0 %1193
    %1195 = vset.pattern.permute.xlu0 0
    %1196 = vperm.xlu0 %1195, %v1153
    %v1197 = vpop.permute.xlu0 %1196
    %1198 = vset.pattern.permute.xlu0 0
    %1199 = vperm.xlu0 %1198, %v1154
    %v1200 = vpop.permute.xlu0 %1199
    %1201 = vset.pattern.permute.xlu0 0
    %1202 = vperm.xlu0 %1201, %v1155
    %v1203 = vpop.permute.xlu0 %1202
    %1204 = vset.pattern.permute.xlu0 0
    %1205 = vperm.xlu0 %1204, %v1156
    %v1206 = vpop.permute.xlu0 %1205
    %1207 = vset.pattern.permute.xlu0 0
    %1208 = vperm.xlu0 %1207, %v1157
    %v1209 = vpop.permute.xlu0 %1208
    %1210 = vset.pattern.permute.xlu0 0
    %1211 = vperm.xlu0 %1210, %v1158
    %v1212 = vpop.permute.xlu0 %1211
    %1213 = vset.pattern.permute.xlu0 0
    %1214 = vperm.xlu0 %1213, %v1159
    %v1215 = vpop.permute.xlu0 %1214
    %1216 = vset.pattern.permute.xlu0 0
    %1217 = vperm.xlu0 %1216, %v1160
    %v1218 = vpop.permute.xlu0 %1217
    %1219 = vset.pattern.permute.xlu0 0
    %1220 = vperm.xlu0 %1219, %v1161
    %v1221 = vpop.permute.xlu0 %1220
    %1222 = vset.pattern.permute.xlu0 0
    %1223 = vperm.xlu0 %1222, %v1162
    %v1224 = vpop.permute.xlu0 %1223
    %1225 = vset.pattern.permute.xlu0 0
    %1226 = vperm.xlu0 %1225, %v1163
    %v1227 = vpop.permute.xlu0 %1226
    %v1228 = vlaneseq
    %v1229 = vshrl.u32 %v1228, 7
    %v1230 = vsub.s32 %v689, %v1229
    %v1231 = vrot.slane %v1182, %v1230
    %v1232 = vlaneseq
    %v1233 = vshrl.u32 %v1232, 7
    %v1234 = vsub.s32 %v689, %v1233
    %v1235 = vrot.slane %v1185, %v1234
    %v1236 = vlaneseq
    %v1237 = vshrl.u32 %v1236, 7
    %v1238 = vsub.s32 %v689, %v1237
    %v1239 = vrot.slane %v1188, %v1238
    %v1240 = vlaneseq
    %v1241 = vshrl.u32 %v1240, 7
    %v1242 = vsub.s32 %v689, %v1241
    %v1243 = vrot.slane %v1191, %v1242
    %v1244 = vlaneseq
    %v1245 = vshrl.u32 %v1244, 7
    %v1246 = vsub.s32 %v689, %v1245
    %v1247 = vrot.slane %v1194, %v1246
    %v1248 = vlaneseq
    %v1249 = vshrl.u32 %v1248, 7
    %v1250 = vsub.s32 %v689, %v1249
    %v1251 = vrot.slane %v1197, %v1250
    %v1252 = vlaneseq
    %v1253 = vshrl.u32 %v1252, 7
    %v1254 = vsub.s32 %v689, %v1253
    %v1255 = vrot.slane %v1200, %v1254
    %v1256 = vlaneseq
    %v1257 = vshrl.u32 %v1256, 7
    %v1258 = vsub.s32 %v689, %v1257
    %v1259 = vrot.slane %v1203, %v1258
    %v1260 = vlaneseq
    %v1261 = vshrl.u32 %v1260, 7
    %v1262 = vsub.s32 %v689, %v1261
    %v1263 = vrot.slane %v1206, %v1262
    %v1264 = vlaneseq
    %v1265 = vshrl.u32 %v1264, 7
    %v1266 = vsub.s32 %v689, %v1265
    %v1267 = vrot.slane %v1209, %v1266
    %v1268 = vlaneseq
    %v1269 = vshrl.u32 %v1268, 7
    %v1270 = vsub.s32 %v689, %v1269
    %v1271 = vrot.slane %v1212, %v1270
    %v1272 = vlaneseq
    %v1273 = vshrl.u32 %v1272, 7
    %v1274 = vsub.s32 %v689, %v1273
    %v1275 = vrot.slane %v1215, %v1274
    %v1276 = vlaneseq
    %v1277 = vshrl.u32 %v1276, 7
    %v1278 = vsub.s32 %v689, %v1277
    %v1279 = vrot.slane %v1218, %v1278
    %v1280 = vlaneseq
    %v1281 = vshrl.u32 %v1280, 7
    %v1282 = vsub.s32 %v689, %v1281
    %v1283 = vrot.slane %v1221, %v1282
    %v1284 = vlaneseq
    %v1285 = vshrl.u32 %v1284, 7
    %v1286 = vsub.s32 %v689, %v1285
    %v1287 = vrot.slane %v1224, %v1286
    %v1288 = vlaneseq
    %v1289 = vshrl.u32 %v1288, 7
    %v1290 = vsub.s32 %v689, %v1289
    %v1291 = vrot.slane %v1227, %v1290
    %v1292 = vsel %vm754, %v1235, %v1231
    %v1293 = vsel %vm756, %v1239, %v1292
    %v1294 = vsel %vm758, %v1243, %v1293
    %v1295 = vsel %vm760, %v1247, %v1294
    %v1296 = vsel %vm762, %v1251, %v1295
    %v1297 = vsel %vm764, %v1255, %v1296
    %v1298 = vsel %vm766, %v1259, %v1297
    %v1299 = vsel %vm754, %v1267, %v1263
    %v1300 = vsel %vm756, %v1271, %v1299
    %v1301 = vsel %vm758, %v1275, %v1300
    %v1302 = vsel %vm760, %v1279, %v1301
    %v1303 = vsel %vm762, %v1283, %v1302
    %v1304 = vsel %vm764, %v1287, %v1303
    %v1305 = vsel %vm766, %v1291, %v1304
    %1308 = vst.msk [vmem:[%s6] sm:$0xff] %vm777, %v1298
    %1309 = vst.msk [vmem:[%s6 + $0x8] sm:$0xff] %vm777, %v1305
    %v1326 = vmul.f32 %v81, %v1182
    %v1327 = vmul.f32 %v82, %v1185
    %v1328 = vmul.f32 %v83, %v1188
    %v1329 = vmul.f32 %v84, %v1191
    %v1330 = vmul.f32 %v85, %v1194
    %v1331 = vmul.f32 %v86, %v1197
    %v1332 = vmul.f32 %v87, %v1200
    %v1333 = vmul.f32 %v88, %v1203
    %v1334 = vmul.f32 %v89, %v1206
    %v1335 = vmul.f32 %v90, %v1209
    %v1336 = vmul.f32 %v91, %v1212
    %v1337 = vmul.f32 %v92, %v1215
    %v1338 = vmul.f32 %v93, %v1218
    %v1339 = vmul.f32 %v94, %v1221
    %v1340 = vmul.f32 %v95, %v1224
    %v1341 = vmul.f32 %v96, %v1227
    %v1342 = vsel %vm103, %v1326, 0.0
    %v1343 = vrot.slane %v1342, 4
    %v1344 = vadd.f32 %v1342, %v1343
    %v1345 = vrot.slane %v1344, 2
    %v1346 = vadd.f32 %v1344, %v1345
    %v1347 = vrot.slane %v1346, 1
    %v1348 = vadd.f32 %v1346, %v1347
    %v1349 = vsel %vm103, %v1327, 0.0
    %v1350 = vrot.slane %v1349, 4
    %v1351 = vadd.f32 %v1349, %v1350
    %v1352 = vrot.slane %v1351, 2
    %v1353 = vadd.f32 %v1351, %v1352
    %v1354 = vrot.slane %v1353, 1
    %v1355 = vadd.f32 %v1353, %v1354
    %v1356 = vsel %vm103, %v1328, 0.0
    %v1357 = vrot.slane %v1356, 4
    %v1358 = vadd.f32 %v1356, %v1357
    %v1359 = vrot.slane %v1358, 2
    %v1360 = vadd.f32 %v1358, %v1359
    %v1361 = vrot.slane %v1360, 1
    %v1362 = vadd.f32 %v1360, %v1361
    %v1363 = vsel %vm103, %v1329, 0.0
    %v1364 = vrot.slane %v1363, 4
    %v1365 = vadd.f32 %v1363, %v1364
    %v1366 = vrot.slane %v1365, 2
    %v1367 = vadd.f32 %v1365, %v1366
    %v1368 = vrot.slane %v1367, 1
    %v1369 = vadd.f32 %v1367, %v1368
    %v1370 = vsel %vm103, %v1330, 0.0
    %v1371 = vrot.slane %v1370, 4
    %v1372 = vadd.f32 %v1370, %v1371
    %v1373 = vrot.slane %v1372, 2
    %v1374 = vadd.f32 %v1372, %v1373
    %v1375 = vrot.slane %v1374, 1
    %v1376 = vadd.f32 %v1374, %v1375
    %v1377 = vsel %vm103, %v1331, 0.0
    %v1378 = vrot.slane %v1377, 4
    %v1379 = vadd.f32 %v1377, %v1378
    %v1380 = vrot.slane %v1379, 2
    %v1381 = vadd.f32 %v1379, %v1380
    %v1382 = vrot.slane %v1381, 1
    %v1383 = vadd.f32 %v1381, %v1382
    %v1384 = vsel %vm103, %v1332, 0.0
    %v1385 = vrot.slane %v1384, 4
    %v1386 = vadd.f32 %v1384, %v1385
    %v1387 = vrot.slane %v1386, 2
    %v1388 = vadd.f32 %v1386, %v1387
    %v1389 = vrot.slane %v1388, 1
    %v1390 = vadd.f32 %v1388, %v1389
    %v1391 = vsel %vm103, %v1333, 0.0
    %v1392 = vrot.slane %v1391, 4
    %v1393 = vadd.f32 %v1391, %v1392
    %v1394 = vrot.slane %v1393, 2
    %v1395 = vadd.f32 %v1393, %v1394
    %v1396 = vrot.slane %v1395, 1
    %v1397 = vadd.f32 %v1395, %v1396
    %v1398 = vsel %vm103, %v1334, 0.0
    %v1399 = vrot.slane %v1398, 4
    %v1400 = vadd.f32 %v1398, %v1399
    %v1401 = vrot.slane %v1400, 2
    %v1402 = vadd.f32 %v1400, %v1401
    %v1403 = vrot.slane %v1402, 1
    %v1404 = vadd.f32 %v1402, %v1403
    %v1405 = vsel %vm103, %v1335, 0.0
    %v1406 = vrot.slane %v1405, 4
    %v1407 = vadd.f32 %v1405, %v1406
    %v1408 = vrot.slane %v1407, 2
    %v1409 = vadd.f32 %v1407, %v1408
    %v1410 = vrot.slane %v1409, 1
    %v1411 = vadd.f32 %v1409, %v1410
    %v1412 = vsel %vm103, %v1336, 0.0
    %v1413 = vrot.slane %v1412, 4
    %v1414 = vadd.f32 %v1412, %v1413
    %v1415 = vrot.slane %v1414, 2
    %v1416 = vadd.f32 %v1414, %v1415
    %v1417 = vrot.slane %v1416, 1
    %v1418 = vadd.f32 %v1416, %v1417
    %v1419 = vsel %vm103, %v1337, 0.0
    %v1420 = vrot.slane %v1419, 4
    %v1421 = vadd.f32 %v1419, %v1420
    %v1422 = vrot.slane %v1421, 2
    %v1423 = vadd.f32 %v1421, %v1422
    %v1424 = vrot.slane %v1423, 1
    %v1425 = vadd.f32 %v1423, %v1424
    %v1426 = vsel %vm103, %v1338, 0.0
    %v1427 = vrot.slane %v1426, 4
    %v1428 = vadd.f32 %v1426, %v1427
    %v1429 = vrot.slane %v1428, 2
    %v1430 = vadd.f32 %v1428, %v1429
    %v1431 = vrot.slane %v1430, 1
    %v1432 = vadd.f32 %v1430, %v1431
    %v1433 = vsel %vm103, %v1339, 0.0
    %v1434 = vrot.slane %v1433, 4
    %v1435 = vadd.f32 %v1433, %v1434
    %v1436 = vrot.slane %v1435, 2
    %v1437 = vadd.f32 %v1435, %v1436
    %v1438 = vrot.slane %v1437, 1
    %v1439 = vadd.f32 %v1437, %v1438
    %v1440 = vsel %vm103, %v1340, 0.0
    %v1441 = vrot.slane %v1440, 4
    %v1442 = vadd.f32 %v1440, %v1441
    %v1443 = vrot.slane %v1442, 2
    %v1444 = vadd.f32 %v1442, %v1443
    %v1445 = vrot.slane %v1444, 1
    %v1446 = vadd.f32 %v1444, %v1445
    %v1447 = vsel %vm103, %v1341, 0.0
    %v1448 = vrot.slane %v1447, 4
    %v1449 = vadd.f32 %v1447, %v1448
    %v1450 = vrot.slane %v1449, 2
    %v1451 = vadd.f32 %v1449, %v1450
    %v1452 = vrot.slane %v1451, 1
    %v1453 = vadd.f32 %v1451, %v1452
    %v1470 = vsel %vm754, %v1355, %v1348
    %v1471 = vsel %vm756, %v1362, %v1470
    %v1472 = vsel %vm758, %v1369, %v1471
    %v1473 = vsel %vm760, %v1376, %v1472
    %v1474 = vsel %vm762, %v1383, %v1473
    %v1475 = vsel %vm764, %v1390, %v1474
    %v1476 = vsel %vm766, %v1397, %v1475
    %v1477 = vsel %vm754, %v1411, %v1404
    %v1478 = vsel %vm756, %v1418, %v1477
    %v1479 = vsel %vm758, %v1425, %v1478
    %v1480 = vsel %vm760, %v1432, %v1479
    %v1481 = vsel %vm762, %v1439, %v1480
    %v1482 = vsel %vm764, %v1446, %v1481
    %v1483 = vsel %vm766, %v1453, %v1482
    %1486 = vst.msk [vmem:[#allocation10] sm:$0xff] %vm103, %v1476
    %1487 = vst.msk [vmem:[#allocation10 + $0x8] sm:$0xff] %vm103, %v1483
    // Predicated region
    $region42: #{tpu_custom_call.1} parent=1 // pred_check
      _
    $region43: #{tpu_custom_call.1} parent=1 // pred_check_branch
      %1489 = sbr.rel (0) target = $region45
    $region44: #{tpu_custom_call.1} parent=1 // pred_region
      _
    $region45: #{tpu_custom_call.1} parent=1 // pred_fallthru
      _
    // Predicated region
    $region46: #{tpu_custom_call.1} parent=1 // pred_check
      _
    $region47: #{tpu_custom_call.1} parent=1 // pred_check_branch
      %1491 = sbr.rel (0) target = $region49
    $region48: #{tpu_custom_call.1} parent=1 // pred_region
      %s1493 = ssub.s32 256, 256
      %1494 = vsyncadd [#allocation4], %s1493
      %s1495 = sshll.u32 [#allocation10], 4
      %s1496 = int_to_ptr.vmem [resolvable:$true] %s1495
      %1501 = dma.vmem_to_hbm [thread:$0]  %s1496, 256, %s7, [#allocation4], 128, 128, 8
    $region49: #{tpu_custom_call.1} parent=1 // pred_fallthru
      _
    // Predicated region
    $region50: #{tpu_custom_call.1} parent=1 // pred_check
      _
    $region51: #{tpu_custom_call.1} parent=1 // pred_check_branch
      %1503 = sbr.rel (0) target = $region53
    $region52: #{tpu_custom_call.1} parent=1 // pred_region
      _
    $region53: #{tpu_custom_call.1} parent=1 // pred_fallthru
      _
    // Predicated region
    $region54: #{tpu_custom_call.1} parent=1 // pred_check
      _
    $region55: #{tpu_custom_call.1} parent=1 // pred_check_branch
      %1505 = sbr.rel (0) target = $region57
    $region56: #{tpu_custom_call.1} parent=1 // pred_region
      %1506 = dma.done [#allocation4], 256
    $region57: #{tpu_custom_call.1} parent=1 // pred_fallthru
      _
    %1507 = vsyncpa [#allocation3], 1
    %1508 = vsyncpa [#allocation6], 1
    %1509 = vsyncpa [#allocation9], 1
    %1510 = vsyncpa [#allocation4], 1

// kernel: tpu_custom_call.1
$region0: #{tpu_custom_call.1}
  #allocation0 [shape = 'u32[]', space=smem, size = 0x4, offset = 0x4, fixed_abs, tag = 'smem constant byte address 0x4 - core index']
  #allocation1 [shape = 'u32[144,128]{1,0:T(1,128)}', space=vmem, size = 0x12000, scoped, tag = 'internal scratch']
  %s0 = inlined_call_operand.hbm [shape: f32[16,8,32], index: 0, kind: input, shape index: {}]
  %s1 = inlined_call_operand.hbm [shape: f32[16,32], index: 1, kind: input, shape index: {}]
  %s2 = inlined_call_operand.hbm [shape: f32[32,32], index: 2, kind: input, shape index: {}]
  %s3 = inlined_call_operand.hbm [shape: f32[32,32], index: 3, kind: input, shape index: {}]
  %s4 = inlined_call_operand.vmem [shape: f32[1,32], index: 4, kind: input, shape index: {}]
  %s5 = inlined_call_operand.vmem [shape: f32[1,32], index: 5, kind: input, shape index: {}]
  %s6 = inlined_call_operand.vmem [shape: f32[16,8], index: 6, kind: output, shape index: {0}]
  %s7 = inlined_call_operand.hbm [shape: f32[16,32], index: 7, kind: output, shape index: {1}]
  %8 = xla_tuple %s6, %s7
  %s9 = sld [smem:[#allocation0]]
  $region58: #{tpu_custom_call.1} parent=0
    _
  %s11 = ssub.s32 1, %s9
  %s12 = scalar_select 0, %s11, %s9
  $region1: #{tpu_custom_call.1} parent=0
    #allocation2 [shape = 'u8[65536]{0}', space=vmem, size = 0x10000, scoped, tag = 'input window, operand 0, single buffered']
    #allocation3 [shape = 's32[1]{0}', space=sflag, size = 0x4, scoped, tag = 'scoped memory for tpu_custom_call.1']
    #allocation4 [shape = 's32[1]{0}', space=sflag, size = 0x4, scoped, tag = 'scoped memory for tpu_custom_call.1']
    #allocation5 [shape = 'u8[8192]{0}', space=vmem, size = 0x2000, scoped, tag = 'input window, operand 1, single buffered']
    #allocation6 [shape = 's32[1]{0}', space=sflag, size = 0x4, scoped, tag = 'scoped memory for tpu_custom_call.1']
    #allocation7 [shape = 'u8[16384]{0}', space=vmem, size = 0x4000, scoped, tag = 'input window, operand 2, single buffered']
    #allocation8 [shape = 'u8[16384]{0}', space=vmem, size = 0x4000, scoped, tag = 'input window, operand 3, single buffered']
    #allocation9 [shape = 's32[1]{0}', space=sflag, size = 0x4, scoped, tag = 'scoped memory for tpu_custom_call.1']
    #allocation10 [shape = 'u8[8192]{0}', space=vmem, size = 0x2000, scoped, tag = 'output window, operand 1, single buffered']
    %13 = vsyncpa [#allocation3], 0
    %14 = vsyncpa [#allocation6], 0
    %15 = vsyncpa [#allocation9], 0
    %16 = vsyncpa [#allocation4], 0
    // Predicated region
    $region2: #{tpu_custom_call.1} parent=1 // pred_check
      _
    $region3: #{tpu_custom_call.1} parent=1 // pred_check_branch
      %18 = sbr.rel (0) target = $region5
    $region4: #{tpu_custom_call.1} parent=1 // pred_region
      %s20 = ssub.s32 2048, 2048
      %21 = vsyncadd [#allocation3], %s20
      %s22 = sshll.u32 [#allocation2], 4
      %s23 = int_to_ptr.vmem [resolvable:$true] %s22
      %28 = dma.hbm_to_vmem [thread:$0]  %s0, 2048, %s23, [#allocation3], 128, 128, 8
    $region5: #{tpu_custom_call.1} parent=1 // pred_fallthru
      _
    // Predicated region
    $region6: #{tpu_custom_call.1} parent=1 // pred_check
      _
    $region7: #{tpu_custom_call.1} parent=1 // pred_check_branch
      %30 = sbr.rel (0) target = $region9
    $region8: #{tpu_custom_call.1} parent=1 // pred_region
      %s32 = ssub.s32 256, 256
      %33 = vsyncadd [#allocation6], %s32
      %s34 = sshll.u32 [#allocation5], 4
      %s35 = int_to_ptr.vmem [resolvable:$true] %s34
      %40 = dma.hbm_to_vmem [thread:$0]  %s1, 256, %s35, [#allocation6], 128, 128, 8
    $region9: #{tpu_custom_call.1} parent=1 // pred_fallthru
      _
    // Predicated region
    $region10: #{tpu_custom_call.1} parent=1 // pred_check
      _
    $region11: #{tpu_custom_call.1} parent=1 // pred_check_branch
      %42 = sbr.rel (0) target = $region13
    $region12: #{tpu_custom_call.1} parent=1 // pred_region
      %s44 = ssub.s32 512, 512
      %45 = vsyncadd [#allocation6], %s44
      %s46 = sshll.u32 [#allocation7], 4
      %s47 = int_to_ptr.vmem [resolvable:$true] %s46
      %52 = dma.hbm_to_vmem [thread:$0]  %s2, 512, %s47, [#allocation6], 128, 128, 8
    $region13: #{tpu_custom_call.1} parent=1 // pred_fallthru
      _
    // Predicated region
    $region14: #{tpu_custom_call.1} parent=1 // pred_check
      _
    $region15: #{tpu_custom_call.1} parent=1 // pred_check_branch
      %54 = sbr.rel (0) target = $region17
    $region16: #{tpu_custom_call.1} parent=1 // pred_region
      %s56 = ssub.s32 512, 512
      %57 = vsyncadd [#allocation9], %s56
      %s58 = sshll.u32 [#allocation8], 4
      %s59 = int_to_ptr.vmem [resolvable:$true] %s58
      %64 = dma.hbm_to_vmem [thread:$0]  %s3, 512, %s59, [#allocation9], 128, 128, 8
    $region17: #{tpu_custom_call.1} parent=1 // pred_fallthru
      _
    // Predicated region
    $region18: #{tpu_custom_call.1} parent=1 // pred_check
      _
    $region19: #{tpu_custom_call.1} parent=1 // pred_check_branch
      %66 = sbr.rel (0) target = $region21
    $region20: #{tpu_custom_call.1} parent=1 // pred_region
      _
    $region21: #{tpu_custom_call.1} parent=1 // pred_fallthru
      _
    // Predicated region
    $region22: #{tpu_custom_call.1} parent=1 // pred_check
      _
    $region23: #{tpu_custom_call.1} parent=1 // pred_check_branch
      %68 = sbr.rel (0) target = $region25
    $region24: #{tpu_custom_call.1} parent=1 // pred_region
      _
    $region25: #{tpu_custom_call.1} parent=1 // pred_fallthru
      _
    // Predicated region
    $region26: #{tpu_custom_call.1} parent=1 // pred_check
      _
    $region27: #{tpu_custom_call.1} parent=1 // pred_check_branch
      %70 = sbr.rel (0) target = $region29
    $region28: #{tpu_custom_call.1} parent=1 // pred_region
      %71 = dma.done [#allocation3], 2048
    $region29: #{tpu_custom_call.1} parent=1 // pred_fallthru
      _
    // Predicated region
    $region30: #{tpu_custom_call.1} parent=1 // pred_check
      _
    $region31: #{tpu_custom_call.1} parent=1 // pred_check_branch
      %73 = sbr.rel (0) target = $region33
    $region32: #{tpu_custom_call.1} parent=1 // pred_region
      %74 = dma.done [#allocation6], 256
    $region33: #{tpu_custom_call.1} parent=1 // pred_fallthru
      _
    // Predicated region
    $region34: #{tpu_custom_call.1} parent=1 // pred_check
      _
    $region35: #{tpu_custom_call.1} parent=1 // pred_check_branch
      %76 = sbr.rel (0) target = $region37
    $region36: #{tpu_custom_call.1} parent=1 // pred_region
      %77 = dma.done [#allocation6], 512
    $region37: #{tpu_custom_call.1} parent=1 // pred_fallthru
      _
    // Predicated region
    $region38: #{tpu_custom_call.1} parent=1 // pred_check
      _
    $region39: #{tpu_custom_call.1} parent=1 // pred_check_branch
      %79 = sbr.rel (0) target = $region41
    $region40: #{tpu_custom_call.1} parent=1 // pred_region
      %80 = dma.done [#allocation9], 512
    $region41: #{tpu_custom_call.1} parent=1 // pred_fallthru
      _
    %v81 = vld [vmem:[#allocation2] sm:$0xff]
    %v82 = vld [vmem:[#allocation2 + $0x8] sm:$0xff]
    %v83 = vld [vmem:[#allocation2 + $0x10] sm:$0xff]
    %v84 = vld [vmem:[#allocation2 + $0x18] sm:$0xff]
    %v85 = vld [vmem:[#allocation2 + $0x20] sm:$0xff]
    %v86 = vld [vmem:[#allocation2 + $0x28] sm:$0xff]
    %v87 = vld [vmem:[#allocation2 + $0x30] sm:$0xff]
    %v88 = vld [vmem:[#allocation2 + $0x38] sm:$0xff]
    %v89 = vld [vmem:[#allocation2 + $0x40] sm:$0xff]
    %v90 = vld [vmem:[#allocation2 + $0x48] sm:$0xff]
    %v91 = vld [vmem:[#allocation2 + $0x50] sm:$0xff]
    %v92 = vld [vmem:[#allocation2 + $0x58] sm:$0xff]
    %v93 = vld [vmem:[#allocation2 + $0x60] sm:$0xff]
    %v94 = vld [vmem:[#allocation2 + $0x68] sm:$0xff]
    %v95 = vld [vmem:[#allocation2 + $0x70] sm:$0xff]
    %v96 = vld [vmem:[#allocation2 + $0x78] sm:$0xff]
    %v97 = vld [vmem:[#allocation5] sm:$0xff]
    %v98 = vld [vmem:[#allocation5 + $0x8] sm:$0xff]
    %v99 = vld [vmem:[#allocation7] sm:$0xff]
    %v100 = vld [vmem:[#allocation7 + $0x8] sm:$0xff]
    %v101 = vld [vmem:[#allocation7 + $0x10] sm:$0xff]
    %v102 = vld [vmem:[#allocation7 + $0x18] sm:$0xff]
    %vm103 = vcmask 261120
    %v105 = vsel %vm103, %v81, 0
    %v108 = vsel %vm103, %v82, 0
    %v111 = vsel %vm103, %v83, 0
    %v114 = vsel %vm103, %v84, 0
    %v117 = vsel %vm103, %v85, 0
    %v120 = vsel %vm103, %v86, 0
    %v123 = vsel %vm103, %v87, 0
    %v126 = vsel %vm103, %v88, 0
    %v129 = vsel %vm103, %v89, 0
    %v132 = vsel %vm103, %v90, 0
    %v135 = vsel %vm103, %v91, 0
    %v138 = vsel %vm103, %v92, 0
    %v141 = vsel %vm103, %v93, 0
    %v144 = vsel %vm103, %v94, 0
    %v147 = vsel %vm103, %v95, 0
    %v150 = vsel %vm103, %v96, 0
    %152 = vmatprep.subr.mxu0 0.0
    %153 = vmatpush1.msra.mxu0 0.0
    %154 = vmatprep.subr.mxu0 0.0
    %155 = vmatpush1.msra.mxu0 0.0
    %156 = vmatprep.subr.mxu0 0.0
    %157 = vmatpush1.msra.mxu0 0.0
    %158 = vmatprep.subr.mxu0 0.0
    %159 = vmatpush1.msra.mxu0 0.0
    %160 = vmatprep.subr.mxu0 0.0
    %161 = vmatpush1.msra.mxu0 0.0
    %162 = vmatprep.subr.mxu0 0.0
    %163 = vmatpush1.msra.mxu0 0.0
    %164 = vmatprep.subr.mxu0 0.0
    %165 = vmatpush1.msra.mxu0 0.0
    %166 = vmatprep.subr.mxu0 0.0
    %167 = vmatpush1.msra.mxu0 0.0
    %168 = vmatprep.subr.mxu0 0.0
    %169 = vmatpush1.msra.mxu0 0.0
    %170 = vmatprep.subr.mxu0 0.0
    %171 = vmatpush1.msra.mxu0 0.0
    %172 = vmatprep.subr.mxu0 0.0
    %173 = vmatpush1.msra.mxu0 0.0
    %174 = vmatprep.subr.mxu0 0.0
    %175 = vmatpush1.msra.mxu0 0.0
    %176 = vmatprep.subr.mxu0 0.0
    %177 = vmatpush1.msra.mxu0 %v102
    %178 = vmatprep.subr.mxu0 0.0
    %179 = vmatpush1.msra.mxu0 %v101
    %180 = vmatprep.subr.mxu0 0.0
    %181 = vmatpush1.msra.mxu0 %v100
    %182 = vmatprep.subr.mxu0 0.0
    %183 = vmatpush1.msra.mxu0 %v99
    %184 = vmatprep.subr.mxu0 0.0
    %185 = vmatpush2.msra.mxu0 0.0
    %186 = vmatprep.subr.mxu0 0.0
    %187 = vmatpush2.msra.mxu0 0.0
    %188 = vmatprep.subr.mxu0 0.0
    %189 = vmatpush2.msra.mxu0 0.0
    %190 = vmatprep.subr.mxu0 0.0
    %191 = vmatpush2.msra.mxu0 0.0
    %192 = vmatprep.subr.mxu0 0.0
    %193 = vmatpush2.msra.mxu0 0.0
    %194 = vmatprep.subr.mxu0 0.0
    %195 = vmatpush2.msra.mxu0 0.0
    %196 = vmatprep.subr.mxu0 0.0
    %197 = vmatpush2.msra.mxu0 0.0
    %198 = vmatprep.subr.mxu0 0.0
    %199 = vmatpush2.msra.mxu0 0.0
    %200 = vmatprep.subr.mxu0 0.0
    %201 = vmatpush2.msra.mxu0 0.0
    %202 = vmatprep.subr.mxu0 0.0
    %203 = vmatpush2.msra.mxu0 0.0
    %204 = vmatprep.subr.mxu0 0.0
    %205 = vmatpush2.msra.mxu0 0.0
    %206 = vmatprep.subr.mxu0 0.0
    %207 = vmatpush2.msra.mxu0 0.0
    %208 = vmatprep.subr.mxu0 0.0
    %209 = vmatpush2.msra.mxu0 0.0
    %210 = vmatprep.subr.mxu0 0.0
    %211 = vmatpush2.msra.mxu0 0.0
    %212 = vmatprep.subr.mxu0 0.0
    %213 = vmatpush2.msra.mxu0 0.0
    %214 = vmatprep.subr.mxu0 0.0
    %215 = vmatpush2.msra.mxu0 0.0
    %216 = vmatprep.mubr.f32.mxu0 0.0
    %217 = vmatmul.mubr.f32.gmra.mxu0 %v105
    %v218 = vpop.f32.mrf.mxu0
    %v219 = vadd.f32 0.0, %v218
    %v220 = vpop.f32.mrf.mxu0
    %221 = vmatprep.mubr.f32.mxu0 0.0
    %222 = vmatmul.mubr.f32.gmra.mxu0 %v108
    %v223 = vpop.f32.mrf.mxu0
    %v224 = vadd.f32 0.0, %v223
    %v225 = vpop.f32.mrf.mxu0
    %226 = vmatprep.mubr.f32.mxu0 0.0
    %227 = vmatmul.mubr.f32.gmra.mxu0 %v111
    %v228 = vpop.f32.mrf.mxu0
    %v229 = vadd.f32 0.0, %v228
    %v230 = vpop.f32.mrf.mxu0
    %231 = vmatprep.mubr.f32.mxu0 0.0
    %232 = vmatmul.mubr.f32.gmra.mxu0 %v114
    %v233 = vpop.f32.mrf.mxu0
    %v234 = vadd.f32 0.0, %v233
    %v235 = vpop.f32.mrf.mxu0
    %236 = vmatprep.mubr.f32.mxu0 0.0
    %237 = vmatmul.mubr.f32.gmra.mxu0 %v117
    %v238 = vpop.f32.mrf.mxu0
    %v239 = vadd.f32 0.0, %v238
    %v240 = vpop.f32.mrf.mxu0
    %241 = vmatprep.mubr.f32.mxu0 0.0
    %242 = vmatmul.mubr.f32.gmra.mxu0 %v120
    %v243 = vpop.f32.mrf.mxu0
    %v244 = vadd.f32 0.0, %v243
    %v245 = vpop.f32.mrf.mxu0
    %246 = vmatprep.mubr.f32.mxu0 0.0
    %247 = vmatmul.mubr.f32.gmra.mxu0 %v123
    %v248 = vpop.f32.mrf.mxu0
    %v249 = vadd.f32 0.0, %v248
    %v250 = vpop.f32.mrf.mxu0
    %251 = vmatprep.mubr.f32.mxu0 0.0
    %252 = vmatmul.mubr.f32.gmra.mxu0 %v126
    %v253 = vpop.f32.mrf.mxu0
    %v254 = vadd.f32 0.0, %v253
    %v255 = vpop.f32.mrf.mxu0
    %256 = vmatprep.mubr.f32.mxu0 0.0
    %257 = vmatmul.mubr.f32.gmra.mxu0 %v129
    %v258 = vpop.f32.mrf.mxu0
    %v259 = vadd.f32 0.0, %v258
    %v260 = vpop.f32.mrf.mxu0
    %261 = vmatprep.mubr.f32.mxu0 0.0
    %262 = vmatmul.mubr.f32.gmra.mxu0 %v132
    %v263 = vpop.f32.mrf.mxu0
    %v264 = vadd.f32 0.0, %v263
    %v265 = vpop.f32.mrf.mxu0
    %266 = vmatprep.mubr.f32.mxu0 0.0
    %267 = vmatmul.mubr.f32.gmra.mxu0 %v135
    %v268 = vpop.f32.mrf.mxu0
    %v269 = vadd.f32 0.0, %v268
    %v270 = vpop.f32.mrf.mxu0
    %271 = vmatprep.mubr.f32.mxu0 0.0
    %272 = vmatmul.mubr.f32.gmra.mxu0 %v138
    %v273 = vpop.f32.mrf.mxu0
    %v274 = vadd.f32 0.0, %v273
    %v275 = vpop.f32.mrf.mxu0
    %276 = vmatprep.mubr.f32.mxu0 0.0
    %277 = vmatmul.mubr.f32.gmra.mxu0 %v141
    %v278 = vpop.f32.mrf.mxu0
    %v279 = vadd.f32 0.0, %v278
    %v280 = vpop.f32.mrf.mxu0
    %281 = vmatprep.mubr.f32.mxu0 0.0
    %282 = vmatmul.mubr.f32.gmra.mxu0 %v144
    %v283 = vpop.f32.mrf.mxu0
    %v284 = vadd.f32 0.0, %v283
    %v285 = vpop.f32.mrf.mxu0
    %286 = vmatprep.mubr.f32.mxu0 0.0
    %287 = vmatmul.mubr.f32.gmra.mxu0 %v147
    %v288 = vpop.f32.mrf.mxu0
    %v289 = vadd.f32 0.0, %v288
    %v290 = vpop.f32.mrf.mxu0
    %291 = vmatprep.mubr.f32.mxu0 0.0
    %292 = vmatmul.mubr.f32.gmra.mxu0 %v150
    %v293 = vpop.f32.mrf.mxu0
    %v294 = vadd.f32 0.0, %v293
    %v295 = vpop.f32.mrf.mxu0
    %296 = vdwg.mxu0
    %v297 = vld [vmem:[#allocation8] sm:$0xff]
    %v298 = vld [vmem:[#allocation8 + $0x8] sm:$0xff]
    %v299 = vld [vmem:[#allocation8 + $0x10] sm:$0xff]
    %v300 = vld [vmem:[#allocation8 + $0x18] sm:$0xff]
    %v301 = vld [vmem:[%s4] sm:$0x1]
    %v303 = vlaneseq
    %v304 = vshrl.u32 %v303, 7
    %v305 = vsub.s32 0, %v304
    %v306 = vrot.slane %v301, %v305
    %v309 = vsel %vm103, %v97, 0
    %v312 = vsel %vm103, %v98, 0
    %314 = vmatprep.subr.mxu0 0.0
    %315 = vmatpush1.msra.mxu0 0.0
    %316 = vmatprep.subr.mxu0 0.0
    %317 = vmatpush1.msra.mxu0 0.0
    %318 = vmatprep.subr.mxu0 0.0
    %319 = vmatpush1.msra.mxu0 0.0
    %320 = vmatprep.subr.mxu0 0.0
    %321 = vmatpush1.msra.mxu0 0.0
    %322 = vmatprep.subr.mxu0 0.0
    %323 = vmatpush1.msra.mxu0 0.0
    %324 = vmatprep.subr.mxu0 0.0
    %325 = vmatpush1.msra.mxu0 0.0
    %326 = vmatprep.subr.mxu0 0.0
    %327 = vmatpush1.msra.mxu0 0.0
    %328 = vmatprep.subr.mxu0 0.0
    %329 = vmatpush1.msra.mxu0 0.0
    %330 = vmatprep.subr.mxu0 0.0
    %331 = vmatpush1.msra.mxu0 0.0
    %332 = vmatprep.subr.mxu0 0.0
    %333 = vmatpush1.msra.mxu0 0.0
    %334 = vmatprep.subr.mxu0 0.0
    %335 = vmatpush1.msra.mxu0 0.0
    %336 = vmatprep.subr.mxu0 0.0
    %337 = vmatpush1.msra.mxu0 0.0
    %338 = vmatprep.subr.mxu0 0.0
    %339 = vmatpush1.msra.mxu0 %v300
    %340 = vmatprep.subr.mxu0 0.0
    %341 = vmatpush1.msra.mxu0 %v299
    %342 = vmatprep.subr.mxu0 0.0
    %343 = vmatpush1.msra.mxu0 %v298
    %344 = vmatprep.subr.mxu0 0.0
    %345 = vmatpush1.msra.mxu0 %v297
    %346 = vmatprep.subr.mxu0 0.0
    %347 = vmatpush2.msra.mxu0 0.0
    %348 = vmatprep.subr.mxu0 0.0
    %349 = vmatpush2.msra.mxu0 0.0
    %350 = vmatprep.subr.mxu0 0.0
    %351 = vmatpush2.msra.mxu0 0.0
    %352 = vmatprep.subr.mxu0 0.0
    %353 = vmatpush2.msra.mxu0 0.0
    %354 = vmatprep.subr.mxu0 0.0
    %355 = vmatpush2.msra.mxu0 0.0
    %356 = vmatprep.subr.mxu0 0.0
    %357 = vmatpush2.msra.mxu0 0.0
    %358 = vmatprep.subr.mxu0 0.0
    %359 = vmatpush2.msra.mxu0 0.0
    %360 = vmatprep.subr.mxu0 0.0
    %361 = vmatpush2.msra.mxu0 0.0
    %362 = vmatprep.subr.mxu0 0.0
    %363 = vmatpush2.msra.mxu0 0.0
    %364 = vmatprep.subr.mxu0 0.0
    %365 = vmatpush2.msra.mxu0 0.0
    %366 = vmatprep.subr.mxu0 0.0
    %367 = vmatpush2.msra.mxu0 0.0
    %368 = vmatprep.subr.mxu0 0.0
    %369 = vmatpush2.msra.mxu0 0.0
    %370 = vmatprep.subr.mxu0 0.0
    %371 = vmatpush2.msra.mxu0 0.0
    %372 = vmatprep.subr.mxu0 0.0
    %373 = vmatpush2.msra.mxu0 0.0
    %374 = vmatprep.subr.mxu0 0.0
    %375 = vmatpush2.msra.mxu0 0.0
    %376 = vmatprep.subr.mxu0 0.0
    %377 = vmatpush2.msra.mxu0 0.0
    %378 = vmatprep.mubr.f32.mxu0 0.0
    %379 = vmatmul.mubr.f32.gmra.mxu0 %v309
    %v380 = vpop.f32.mrf.mxu0
    %v381 = vadd.f32 %v306, %v380
    %v382 = vpop.f32.mrf.mxu0
    %383 = vmatprep.mubr.f32.mxu0 0.0
    %384 = vmatmul.mubr.f32.gmra.mxu0 %v312
    %v385 = vpop.f32.mrf.mxu0
    %v386 = vadd.f32 %v306, %v385
    %v387 = vpop.f32.mrf.mxu0
    %388 = vdwg.mxu0
    %v391 = vcombine.high %v381, %v381
    %v393 = vunpack.c.l.s4 1966171168
    %v394 = vunpack.c.0.s8 %v393
    %v395 = vlaneseq
    %v396 = vshrl.u32 %v395, 7
    %v397 = vsub.s32 %v394, %v396
    %v398 = vrot.slane %v381, %v397
    %v400 = vunpack.c.l.s4 1966171168
    %v401 = vunpack.c.0.s8 %v400
    %v402 = vlaneseq
    %v403 = vshrl.u32 %v402, 7
    %v404 = vsub.s32 %v401, %v403
    %v405 = vrot.slane %v391, %v404
    %v406 = vcombine.high %v398, %v398
    %v407 = vcombine.high %v405, %v405
    %v409 = vunpack.c.l.s4 1966171168
    %v410 = vunpack.c.0.s8 %v409
    %v411 = vlaneseq
    %v412 = vshrl.u32 %v411, 7
    %v413 = vsub.s32 %v410, %v412
    %v414 = vrot.slane %v398, %v413
    %v416 = vunpack.c.l.s4 1966171168
    %v417 = vunpack.c.0.s8 %v416
    %v418 = vlaneseq
    %v419 = vshrl.u32 %v418, 7
    %v420 = vsub.s32 %v417, %v419
    %v421 = vrot.slane %v405, %v420
    %v423 = vunpack.c.l.s4 1966171168
    %v424 = vunpack.c.0.s8 %v423
    %v425 = vlaneseq
    %v426 = vshrl.u32 %v425, 7
    %v427 = vsub.s32 %v424, %v426
    %v428 = vrot.slane %v406, %v427
    %v430 = vunpack.c.l.s4 1966171168
    %v431 = vunpack.c.0.s8 %v430
    %v432 = vlaneseq
    %v433 = vshrl.u32 %v432, 7
    %v434 = vsub.s32 %v431, %v433
    %v435 = vrot.slane %v407, %v434
    %v436 = vcombine.high %v414, %v414
    %v437 = vcombine.high %v421, %v421
    %v438 = vcombine.high %v428, %v428
    %v439 = vcombine.high %v435, %v435
    %v440 = vcombine.high %v386, %v386
    %v442 = vunpack.c.l.s4 1966171168
    %v443 = vunpack.c.0.s8 %v442
    %v444 = vlaneseq
    %v445 = vshrl.u32 %v444, 7
    %v446 = vsub.s32 %v443, %v445
    %v447 = vrot.slane %v386, %v446
    %v449 = vunpack.c.l.s4 1966171168
    %v450 = vunpack.c.0.s8 %v449
    %v451 = vlaneseq
    %v452 = vshrl.u32 %v451, 7
    %v453 = vsub.s32 %v450, %v452
    %v454 = vrot.slane %v440, %v453
    %v455 = vcombine.high %v447, %v447
    %v456 = vcombine.high %v454, %v454
    %v458 = vunpack.c.l.s4 1966171168
    %v459 = vunpack.c.0.s8 %v458
    %v460 = vlaneseq
    %v461 = vshrl.u32 %v460, 7
    %v462 = vsub.s32 %v459, %v461
    %v463 = vrot.slane %v447, %v462
    %v465 = vunpack.c.l.s4 1966171168
    %v466 = vunpack.c.0.s8 %v465
    %v467 = vlaneseq
    %v468 = vshrl.u32 %v467, 7
    %v469 = vsub.s32 %v466, %v468
    %v470 = vrot.slane %v454, %v469
    %v472 = vunpack.c.l.s4 1966171168
    %v473 = vunpack.c.0.s8 %v472
    %v474 = vlaneseq
    %v475 = vshrl.u32 %v474, 7
    %v476 = vsub.s32 %v473, %v475
    %v477 = vrot.slane %v455, %v476
    %v479 = vunpack.c.l.s4 1966171168
    %v480 = vunpack.c.0.s8 %v479
    %v481 = vlaneseq
    %v482 = vshrl.u32 %v481, 7
    %v483 = vsub.s32 %v480, %v482
    %v484 = vrot.slane %v456, %v483
    %v485 = vcombine.high %v463, %v463
    %v486 = vcombine.high %v470, %v470
    %v487 = vcombine.high %v477, %v477
    %v488 = vcombine.high %v484, %v484
    %v489 = vlaneseq
    %v490 = vshrl.u32 %v489, 7
    %v491 = vsub.s32 0, %v490
    %v492 = vrot.slane %v414, %v491
    %v493 = vlaneseq
    %v494 = vshrl.u32 %v493, 7
    %v495 = vsub.s32 0, %v494
    %v496 = vrot.slane %v428, %v495
    %v497 = vlaneseq
    %v498 = vshrl.u32 %v497, 7
    %v499 = vsub.s32 0, %v498
    %v500 = vrot.slane %v436, %v499
    %v501 = vlaneseq
    %v502 = vshrl.u32 %v501, 7
    %v503 = vsub.s32 0, %v502
    %v504 = vrot.slane %v438, %v503
    %v505 = vlaneseq
    %v506 = vshrl.u32 %v505, 7
    %v507 = vsub.s32 0, %v506
    %v508 = vrot.slane %v421, %v507
    %v509 = vlaneseq
    %v510 = vshrl.u32 %v509, 7
    %v511 = vsub.s32 0, %v510
    %v512 = vrot.slane %v435, %v511
    %v513 = vlaneseq
    %v514 = vshrl.u32 %v513, 7
    %v515 = vsub.s32 0, %v514
    %v516 = vrot.slane %v437, %v515
    %v517 = vlaneseq
    %v518 = vshrl.u32 %v517, 7
    %v519 = vsub.s32 0, %v518
    %v520 = vrot.slane %v439, %v519
    %v521 = vlaneseq
    %v522 = vshrl.u32 %v521, 7
    %v523 = vsub.s32 0, %v522
    %v524 = vrot.slane %v463, %v523
    %v525 = vlaneseq
    %v526 = vshrl.u32 %v525, 7
    %v527 = vsub.s32 0, %v526
    %v528 = vrot.slane %v477, %v527
    %v529 = vlaneseq
    %v530 = vshrl.u32 %v529, 7
    %v531 = vsub.s32 0, %v530
    %v532 = vrot.slane %v485, %v531
    %v533 = vlaneseq
    %v534 = vshrl.u32 %v533, 7
    %v535 = vsub.s32 0, %v534
    %v536 = vrot.slane %v487, %v535
    %v537 = vlaneseq
    %v538 = vshrl.u32 %v537, 7
    %v539 = vsub.s32 0, %v538
    %v540 = vrot.slane %v470, %v539
    %v541 = vlaneseq
    %v542 = vshrl.u32 %v541, 7
    %v543 = vsub.s32 0, %v542
    %v544 = vrot.slane %v484, %v543
    %v545 = vlaneseq
    %v546 = vshrl.u32 %v545, 7
    %v547 = vsub.s32 0, %v546
    %v548 = vrot.slane %v486, %v547
    %v549 = vlaneseq
    %v550 = vshrl.u32 %v549, 7
    %v551 = vsub.s32 0, %v550
    %v552 = vrot.slane %v488, %v551
    %v569 = vadd.f32 %v219, %v492
    %v570 = vadd.f32 %v224, %v496
    %v571 = vadd.f32 %v229, %v500
    %v572 = vadd.f32 %v234, %v504
    %v573 = vadd.f32 %v239, %v508
    %v574 = vadd.f32 %v244, %v512
    %v575 = vadd.f32 %v249, %v516
    %v576 = vadd.f32 %v254, %v520
    %v577 = vadd.f32 %v259, %v524
    %v578 = vadd.f32 %v264, %v528
    %v579 = vadd.f32 %v269, %v532
    %v580 = vadd.f32 %v274, %v536
    %v581 = vadd.f32 %v279, %v540
    %v582 = vadd.f32 %v284, %v544
    %v583 = vadd.f32 %v289, %v548
    %v584 = vadd.f32 %v294, %v552
    %v585 = vtanh.pop %v569
    %v586 = vtanh.pop %v570
    %v587 = vtanh.pop %v571
    %v588 = vtanh.pop %v572
    %v589 = vtanh.pop %v573
    %v590 = vtanh.pop %v574
    %v591 = vtanh.pop %v575
    %v592 = vtanh.pop %v576
    %v593 = vtanh.pop %v577
    %v594 = vtanh.pop %v578
    %v595 = vtanh.pop %v579
    %v596 = vtanh.pop %v580
    %v597 = vtanh.pop %v581
    %v598 = vtanh.pop %v582
    %v599 = vtanh.pop %v583
    %v600 = vtanh.pop %v584
    %v601 = vld [vmem:[%s5] sm:$0x1]
    %v603 = vlaneseq
    %v604 = vshrl.u32 %v603, 7
    %v605 = vsub.s32 0, %v604
    %v606 = vrot.slane %v601, %v605
    %v608 = vmul.f32 %v585, %v606
    %v609 = vmul.f32 %v586, %v606
    %v610 = vmul.f32 %v587, %v606
    %v611 = vmul.f32 %v588, %v606
    %v612 = vmul.f32 %v589, %v606
    %v613 = vmul.f32 %v590, %v606
    %v614 = vmul.f32 %v591, %v606
    %v615 = vmul.f32 %v592, %v606
    %v616 = vmul.f32 %v593, %v606
    %v617 = vmul.f32 %v594, %v606
    %v618 = vmul.f32 %v595, %v606
    %v619 = vmul.f32 %v596, %v606
    %v620 = vmul.f32 %v597, %v606
    %v621 = vmul.f32 %v598, %v606
    %v622 = vmul.f32 %v599, %v606
    %v623 = vmul.f32 %v600, %v606
    %v624 = vsel %vm103, %v608, 0.0
    %625 = vadd.xlane.f32.xlu0 %v624
    %v626 = vpop.xlane.xlu0 %625
    %v627 = vsel %vm103, %v609, 0.0
    %628 = vadd.xlane.f32.xlu0 %v627
    %v629 = vpop.xlane.xlu0 %628
    %v630 = vsel %vm103, %v610, 0.0
    %631 = vadd.xlane.f32.xlu0 %v630
    %v632 = vpop.xlane.xlu0 %631
    %v633 = vsel %vm103, %v611, 0.0
    %634 = vadd.xlane.f32.xlu0 %v633
    %v635 = vpop.xlane.xlu0 %634
    %v636 = vsel %vm103, %v612, 0.0
    %637 = vadd.xlane.f32.xlu0 %v636
    %v638 = vpop.xlane.xlu0 %637
    %v639 = vsel %vm103, %v613, 0.0
    %640 = vadd.xlane.f32.xlu0 %v639
    %v641 = vpop.xlane.xlu0 %640
    %v642 = vsel %vm103, %v614, 0.0
    %643 = vadd.xlane.f32.xlu0 %v642
    %v644 = vpop.xlane.xlu0 %643
    %v645 = vsel %vm103, %v615, 0.0
    %646 = vadd.xlane.f32.xlu0 %v645
    %v647 = vpop.xlane.xlu0 %646
    %v648 = vsel %vm103, %v616, 0.0
    %649 = vadd.xlane.f32.xlu0 %v648
    %v650 = vpop.xlane.xlu0 %649
    %v651 = vsel %vm103, %v617, 0.0
    %652 = vadd.xlane.f32.xlu0 %v651
    %v653 = vpop.xlane.xlu0 %652
    %v654 = vsel %vm103, %v618, 0.0
    %655 = vadd.xlane.f32.xlu0 %v654
    %v656 = vpop.xlane.xlu0 %655
    %v657 = vsel %vm103, %v619, 0.0
    %658 = vadd.xlane.f32.xlu0 %v657
    %v659 = vpop.xlane.xlu0 %658
    %v660 = vsel %vm103, %v620, 0.0
    %661 = vadd.xlane.f32.xlu0 %v660
    %v662 = vpop.xlane.xlu0 %661
    %v663 = vsel %vm103, %v621, 0.0
    %664 = vadd.xlane.f32.xlu0 %v663
    %v665 = vpop.xlane.xlu0 %664
    %v666 = vsel %vm103, %v622, 0.0
    %667 = vadd.xlane.f32.xlu0 %v666
    %v668 = vpop.xlane.xlu0 %667
    %v669 = vsel %vm103, %v623, 0.0
    %670 = vadd.xlane.f32.xlu0 %v669
    %v671 = vpop.xlane.xlu0 %670
    %v688 = vlaneseq
    %v689 = vand.u32 %v688, 127
    %v690 = vlaneseq
    %v691 = vshrl.u32 %v690, 7
    %v692 = vsub.s32 %v689, %v691
    %v693 = vrot.slane %v626, %v692
    %v694 = vlaneseq
    %v695 = vshrl.u32 %v694, 7
    %v696 = vsub.s32 %v689, %v695
    %v697 = vrot.slane %v629, %v696
    %v698 = vlaneseq
    %v699 = vshrl.u32 %v698, 7
    %v700 = vsub.s32 %v689, %v699
    %v701 = vrot.slane %v632, %v700
    %v702 = vlaneseq
    %v703 = vshrl.u32 %v702, 7
    %v704 = vsub.s32 %v689, %v703
    %v705 = vrot.slane %v635, %v704
    %v706 = vlaneseq
    %v707 = vshrl.u32 %v706, 7
    %v708 = vsub.s32 %v689, %v707
    %v709 = vrot.slane %v638, %v708
    %v710 = vlaneseq
    %v711 = vshrl.u32 %v710, 7
    %v712 = vsub.s32 %v689, %v711
    %v713 = vrot.slane %v641, %v712
    %v714 = vlaneseq
    %v715 = vshrl.u32 %v714, 7
    %v716 = vsub.s32 %v689, %v715
    %v717 = vrot.slane %v644, %v716
    %v718 = vlaneseq
    %v719 = vshrl.u32 %v718, 7
    %v720 = vsub.s32 %v689, %v719
    %v721 = vrot.slane %v647, %v720
    %v722 = vlaneseq
    %v723 = vshrl.u32 %v722, 7
    %v724 = vsub.s32 %v689, %v723
    %v725 = vrot.slane %v650, %v724
    %v726 = vlaneseq
    %v727 = vshrl.u32 %v726, 7
    %v728 = vsub.s32 %v689, %v727
    %v729 = vrot.slane %v653, %v728
    %v730 = vlaneseq
    %v731 = vshrl.u32 %v730, 7
    %v732 = vsub.s32 %v689, %v731
    %v733 = vrot.slane %v656, %v732
    %v734 = vlaneseq
    %v735 = vshrl.u32 %v734, 7
    %v736 = vsub.s32 %v689, %v735
    %v737 = vrot.slane %v659, %v736
    %v738 = vlaneseq
    %v739 = vshrl.u32 %v738, 7
    %v740 = vsub.s32 %v689, %v739
    %v741 = vrot.slane %v662, %v740
    %v742 = vlaneseq
    %v743 = vshrl.u32 %v742, 7
    %v744 = vsub.s32 %v689, %v743
    %v745 = vrot.slane %v665, %v744
    %v746 = vlaneseq
    %v747 = vshrl.u32 %v746, 7
    %v748 = vsub.s32 %v689, %v747
    %v749 = vrot.slane %v668, %v748
    %v750 = vlaneseq
    %v751 = vshrl.u32 %v750, 7
    %v752 = vsub.s32 %v689, %v751
    %v753 = vrot.slane %v671, %v752
    %vm754 = vcmask 1041409
    %v755 = vsel %vm754, %v697, %v693
    %vm756 = vcmask 1042434
    %v757 = vsel %vm756, %v701, %v755
    %vm758 = vcmask 1043459
    %v759 = vsel %vm758, %v705, %v757
    %vm760 = vcmask 1044484
    %v761 = vsel %vm760, %v709, %v759
    %vm762 = vcmask 1045509
    %v763 = vsel %vm762, %v713, %v761
    %vm764 = vcmask 1046534
    %v765 = vsel %vm764, %v717, %v763
    %vm766 = vcmask 1047559
    %v767 = vsel %vm766, %v721, %v765
    %v768 = vsel %vm754, %v729, %v725
    %v769 = vsel %vm756, %v733, %v768
    %v770 = vsel %vm758, %v737, %v769
    %v771 = vsel %vm760, %v741, %v770
    %v772 = vsel %vm762, %v745, %v771
    %v773 = vsel %vm764, %v749, %v772
    %v774 = vsel %vm766, %v753, %v773
    %vm777 = vcmask 64512
    %v778 = vsel %vm777, %v767, -inf
    %779 = vmax.xlane.f32.xlu0 %v778
    %v780 = vpop.xlane.xlu0 %779
    %v781 = vsel %vm777, %v774, -inf
    %782 = vmax.xlane.f32.xlu0 %v781
    %v783 = vpop.xlane.xlu0 %782
    %v786 = vlaneseq
    %v787 = vshrl.u32 %v786, 7
    %v788 = vsub.s32 0, %v787
    %v789 = vrot.slane %v780, %v788
    %v790 = vlaneseq
    %v791 = vshrl.u32 %v790, 7
    %v792 = vsub.s32 1, %v791
    %v793 = vrot.slane %v780, %v792
    %v794 = vlaneseq
    %v795 = vshrl.u32 %v794, 7
    %v796 = vsub.s32 2, %v795
    %v797 = vrot.slane %v780, %v796
    %v798 = vlaneseq
    %v799 = vshrl.u32 %v798, 7
    %v800 = vsub.s32 3, %v799
    %v801 = vrot.slane %v780, %v800
    %v802 = vlaneseq
    %v803 = vshrl.u32 %v802, 7
    %v804 = vsub.s32 4, %v803
    %v805 = vrot.slane %v780, %v804
    %v806 = vlaneseq
    %v807 = vshrl.u32 %v806, 7
    %v808 = vsub.s32 5, %v807
    %v809 = vrot.slane %v780, %v808
    %v810 = vlaneseq
    %v811 = vshrl.u32 %v810, 7
    %v812 = vsub.s32 6, %v811
    %v813 = vrot.slane %v780, %v812
    %v814 = vlaneseq
    %v815 = vshrl.u32 %v814, 7
    %v816 = vsub.s32 7, %v815
    %v817 = vrot.slane %v780, %v816
    %v818 = vlaneseq
    %v819 = vshrl.u32 %v818, 7
    %v820 = vsub.s32 0, %v819
    %v821 = vrot.slane %v783, %v820
    %v822 = vlaneseq
    %v823 = vshrl.u32 %v822, 7
    %v824 = vsub.s32 1, %v823
    %v825 = vrot.slane %v783, %v824
    %v826 = vlaneseq
    %v827 = vshrl.u32 %v826, 7
    %v828 = vsub.s32 2, %v827
    %v829 = vrot.slane %v783, %v828
    %v830 = vlaneseq
    %v831 = vshrl.u32 %v830, 7
    %v832 = vsub.s32 3, %v831
    %v833 = vrot.slane %v783, %v832
    %v834 = vlaneseq
    %v835 = vshrl.u32 %v834, 7
    %v836 = vsub.s32 4, %v835
    %v837 = vrot.slane %v783, %v836
    %v838 = vlaneseq
    %v839 = vshrl.u32 %v838, 7
    %v840 = vsub.s32 5, %v839
    %v841 = vrot.slane %v783, %v840
    %v842 = vlaneseq
    %v843 = vshrl.u32 %v842, 7
    %v844 = vsub.s32 6, %v843
    %v845 = vrot.slane %v783, %v844
    %v846 = vlaneseq
    %v847 = vshrl.u32 %v846, 7
    %v848 = vsub.s32 7, %v847
    %v849 = vrot.slane %v783, %v848
    %v866 = vsub.f32 %v626, %v789
    %v867 = vsub.f32 %v629, %v793
    %v868 = vsub.f32 %v632, %v797
    %v869 = vsub.f32 %v635, %v801
    %v870 = vsub.f32 %v638, %v805
    %v871 = vsub.f32 %v641, %v809
    %v872 = vsub.f32 %v644, %v813
    %v873 = vsub.f32 %v647, %v817
    %v874 = vsub.f32 %v650, %v821
    %v875 = vsub.f32 %v653, %v825
    %v876 = vsub.f32 %v656, %v829
    %v877 = vsub.f32 %v659, %v833
    %v878 = vsub.f32 %v662, %v837
    %v879 = vsub.f32 %v665, %v841
    %v880 = vsub.f32 %v668, %v845
    %v881 = vsub.f32 %v671, %v849
    %v882 = vmul.f32 %v866, 1.442695
    %v883 = vpow.pop %v882
    %v884 = vmul.f32 %v867, 1.442695
    %v885 = vpow.pop %v884
    %v886 = vmul.f32 %v868, 1.442695
    %v887 = vpow.pop %v886
    %v888 = vmul.f32 %v869, 1.442695
    %v889 = vpow.pop %v888
    %v890 = vmul.f32 %v870, 1.442695
    %v891 = vpow.pop %v890
    %v892 = vmul.f32 %v871, 1.442695
    %v893 = vpow.pop %v892
    %v894 = vmul.f32 %v872, 1.442695
    %v895 = vpow.pop %v894
    %v896 = vmul.f32 %v873, 1.442695
    %v897 = vpow.pop %v896
    %v898 = vmul.f32 %v874, 1.442695
    %v899 = vpow.pop %v898
    %v900 = vmul.f32 %v875, 1.442695
    %v901 = vpow.pop %v900
    %v902 = vmul.f32 %v876, 1.442695
    %v903 = vpow.pop %v902
    %v904 = vmul.f32 %v877, 1.442695
    %v905 = vpow.pop %v904
    %v906 = vmul.f32 %v878, 1.442695
    %v907 = vpow.pop %v906
    %v908 = vmul.f32 %v879, 1.442695
    %v909 = vpow.pop %v908
    %v910 = vmul.f32 %v880, 1.442695
    %v911 = vpow.pop %v910
    %v912 = vmul.f32 %v881, 1.442695
    %v913 = vpow.pop %v912
    %930 = vset.pattern.permute.xlu0 0
    %931 = vperm.xlu0 %930, %v883
    %v932 = vpop.permute.xlu0 %931
    %933 = vset.pattern.permute.xlu0 0
    %934 = vperm.xlu0 %933, %v885
    %v935 = vpop.permute.xlu0 %934
    %936 = vset.pattern.permute.xlu0 0
    %937 = vperm.xlu0 %936, %v887
    %v938 = vpop.permute.xlu0 %937
    %939 = vset.pattern.permute.xlu0 0
    %940 = vperm.xlu0 %939, %v889
    %v941 = vpop.permute.xlu0 %940
    %942 = vset.pattern.permute.xlu0 0
    %943 = vperm.xlu0 %942, %v891
    %v944 = vpop.permute.xlu0 %943
    %945 = vset.pattern.permute.xlu0 0
    %946 = vperm.xlu0 %945, %v893
    %v947 = vpop.permute.xlu0 %946
    %948 = vset.pattern.permute.xlu0 0
    %949 = vperm.xlu0 %948, %v895
    %v950 = vpop.permute.xlu0 %949
    %951 = vset.pattern.permute.xlu0 0
    %952 = vperm.xlu0 %951, %v897
    %v953 = vpop.permute.xlu0 %952
    %954 = vset.pattern.permute.xlu0 0
    %955 = vperm.xlu0 %954, %v899
    %v956 = vpop.permute.xlu0 %955
    %957 = vset.pattern.permute.xlu0 0
    %958 = vperm.xlu0 %957, %v901
    %v959 = vpop.permute.xlu0 %958
    %960 = vset.pattern.permute.xlu0 0
    %961 = vperm.xlu0 %960, %v903
    %v962 = vpop.permute.xlu0 %961
    %963 = vset.pattern.permute.xlu0 0
    %964 = vperm.xlu0 %963, %v905
    %v965 = vpop.permute.xlu0 %964
    %966 = vset.pattern.permute.xlu0 0
    %967 = vperm.xlu0 %966, %v907
    %v968 = vpop.permute.xlu0 %967
    %969 = vset.pattern.permute.xlu0 0
    %970 = vperm.xlu0 %969, %v909
    %v971 = vpop.permute.xlu0 %970
    %972 = vset.pattern.permute.xlu0 0
    %973 = vperm.xlu0 %972, %v911
    %v974 = vpop.permute.xlu0 %973
    %975 = vset.pattern.permute.xlu0 0
    %976 = vperm.xlu0 %975, %v913
    %v977 = vpop.permute.xlu0 %976
    %v978 = vlaneseq
    %v979 = vshrl.u32 %v978, 7
    %v980 = vsub.s32 %v689, %v979
    %v981 = vrot.slane %v932, %v980
    %v982 = vlaneseq
    %v983 = vshrl.u32 %v982, 7
    %v984 = vsub.s32 %v689, %v983
    %v985 = vrot.slane %v935, %v984
    %v986 = vlaneseq
    %v987 = vshrl.u32 %v986, 7
    %v988 = vsub.s32 %v689, %v987
    %v989 = vrot.slane %v938, %v988
    %v990 = vlaneseq
    %v991 = vshrl.u32 %v990, 7
    %v992 = vsub.s32 %v689, %v991
    %v993 = vrot.slane %v941, %v992
    %v994 = vlaneseq
    %v995 = vshrl.u32 %v994, 7
    %v996 = vsub.s32 %v689, %v995
    %v997 = vrot.slane %v944, %v996
    %v998 = vlaneseq
    %v999 = vshrl.u32 %v998, 7
    %v1000 = vsub.s32 %v689, %v999
    %v1001 = vrot.slane %v947, %v1000
    %v1002 = vlaneseq
    %v1003 = vshrl.u32 %v1002, 7
    %v1004 = vsub.s32 %v689, %v1003
    %v1005 = vrot.slane %v950, %v1004
    %v1006 = vlaneseq
    %v1007 = vshrl.u32 %v1006, 7
    %v1008 = vsub.s32 %v689, %v1007
    %v1009 = vrot.slane %v953, %v1008
    %v1010 = vlaneseq
    %v1011 = vshrl.u32 %v1010, 7
    %v1012 = vsub.s32 %v689, %v1011
    %v1013 = vrot.slane %v956, %v1012
    %v1014 = vlaneseq
    %v1015 = vshrl.u32 %v1014, 7
    %v1016 = vsub.s32 %v689, %v1015
    %v1017 = vrot.slane %v959, %v1016
    %v1018 = vlaneseq
    %v1019 = vshrl.u32 %v1018, 7
    %v1020 = vsub.s32 %v689, %v1019
    %v1021 = vrot.slane %v962, %v1020
    %v1022 = vlaneseq
    %v1023 = vshrl.u32 %v1022, 7
    %v1024 = vsub.s32 %v689, %v1023
    %v1025 = vrot.slane %v965, %v1024
    %v1026 = vlaneseq
    %v1027 = vshrl.u32 %v1026, 7
    %v1028 = vsub.s32 %v689, %v1027
    %v1029 = vrot.slane %v968, %v1028
    %v1030 = vlaneseq
    %v1031 = vshrl.u32 %v1030, 7
    %v1032 = vsub.s32 %v689, %v1031
    %v1033 = vrot.slane %v971, %v1032
    %v1034 = vlaneseq
    %v1035 = vshrl.u32 %v1034, 7
    %v1036 = vsub.s32 %v689, %v1035
    %v1037 = vrot.slane %v974, %v1036
    %v1038 = vlaneseq
    %v1039 = vshrl.u32 %v1038, 7
    %v1040 = vsub.s32 %v689, %v1039
    %v1041 = vrot.slane %v977, %v1040
    %v1042 = vsel %vm754, %v985, %v981
    %v1043 = vsel %vm756, %v989, %v1042
    %v1044 = vsel %vm758, %v993, %v1043
    %v1045 = vsel %vm760, %v997, %v1044
    %v1046 = vsel %vm762, %v1001, %v1045
    %v1047 = vsel %vm764, %v1005, %v1046
    %v1048 = vsel %vm766, %v1009, %v1047
    %v1049 = vsel %vm754, %v1017, %v1013
    %v1050 = vsel %vm756, %v1021, %v1049
    %v1051 = vsel %vm758, %v1025, %v1050
    %v1052 = vsel %vm760, %v1029, %v1051
    %v1053 = vsel %vm762, %v1033, %v1052
    %v1054 = vsel %vm764, %v1037, %v1053
    %v1055 = vsel %vm766, %v1041, %v1054
    %v1058 = vsel %vm777, %v1048, 0.0
    %1059 = vadd.xlane.f32.xlu0 %v1058
    %v1060 = vpop.xlane.xlu0 %1059
    %v1061 = vsel %vm777, %v1055, 0.0
    %1062 = vadd.xlane.f32.xlu0 %v1061
    %v1063 = vpop.xlane.xlu0 %1062
    %v1064 = vrcp.pop %v1060
    %v1065 = vrcp.pop %v1063
    %v1068 = vlaneseq
    %v1069 = vshrl.u32 %v1068, 7
    %v1070 = vsub.s32 0, %v1069
    %v1071 = vrot.slane %v1064, %v1070
    %v1072 = vlaneseq
    %v1073 = vshrl.u32 %v1072, 7
    %v1074 = vsub.s32 1, %v1073
    %v1075 = vrot.slane %v1064, %v1074
    %v1076 = vlaneseq
    %v1077 = vshrl.u32 %v1076, 7
    %v1078 = vsub.s32 2, %v1077
    %v1079 = vrot.slane %v1064, %v1078
    %v1080 = vlaneseq
    %v1081 = vshrl.u32 %v1080, 7
    %v1082 = vsub.s32 3, %v1081
    %v1083 = vrot.slane %v1064, %v1082
    %v1084 = vlaneseq
    %v1085 = vshrl.u32 %v1084, 7
    %v1086 = vsub.s32 4, %v1085
    %v1087 = vrot.slane %v1064, %v1086
    %v1088 = vlaneseq
    %v1089 = vshrl.u32 %v1088, 7
    %v1090 = vsub.s32 5, %v1089
    %v1091 = vrot.slane %v1064, %v1090
    %v1092 = vlaneseq
    %v1093 = vshrl.u32 %v1092, 7
    %v1094 = vsub.s32 6, %v1093
    %v1095 = vrot.slane %v1064, %v1094
    %v1096 = vlaneseq
    %v1097 = vshrl.u32 %v1096, 7
    %v1098 = vsub.s32 7, %v1097
    %v1099 = vrot.slane %v1064, %v1098
    %v1100 = vlaneseq
    %v1101 = vshrl.u32 %v1100, 7
    %v1102 = vsub.s32 0, %v1101
    %v1103 = vrot.slane %v1065, %v1102
    %v1104 = vlaneseq
    %v1105 = vshrl.u32 %v1104, 7
    %v1106 = vsub.s32 1, %v1105
    %v1107 = vrot.slane %v1065, %v1106
    %v1108 = vlaneseq
    %v1109 = vshrl.u32 %v1108, 7
    %v1110 = vsub.s32 2, %v1109
    %v1111 = vrot.slane %v1065, %v1110
    %v1112 = vlaneseq
    %v1113 = vshrl.u32 %v1112, 7
    %v1114 = vsub.s32 3, %v1113
    %v1115 = vrot.slane %v1065, %v1114
    %v1116 = vlaneseq
    %v1117 = vshrl.u32 %v1116, 7
    %v1118 = vsub.s32 4, %v1117
    %v1119 = vrot.slane %v1065, %v1118
    %v1120 = vlaneseq
    %v1121 = vshrl.u32 %v1120, 7
    %v1122 = vsub.s32 5, %v1121
    %v1123 = vrot.slane %v1065, %v1122
    %v1124 = vlaneseq
    %v1125 = vshrl.u32 %v1124, 7
    %v1126 = vsub.s32 6, %v1125
    %v1127 = vrot.slane %v1065, %v1126
    %v1128 = vlaneseq
    %v1129 = vshrl.u32 %v1128, 7
    %v1130 = vsub.s32 7, %v1129
    %v1131 = vrot.slane %v1065, %v1130
    %v1148 = vmul.f32 %v883, %v1071
    %v1149 = vmul.f32 %v885, %v1075
    %v1150 = vmul.f32 %v887, %v1079
    %v1151 = vmul.f32 %v889, %v1083
    %v1152 = vmul.f32 %v891, %v1087
    %v1153 = vmul.f32 %v893, %v1091
    %v1154 = vmul.f32 %v895, %v1095
    %v1155 = vmul.f32 %v897, %v1099
    %v1156 = vmul.f32 %v899, %v1103
    %v1157 = vmul.f32 %v901, %v1107
    %v1158 = vmul.f32 %v903, %v1111
    %v1159 = vmul.f32 %v905, %v1115
    %v1160 = vmul.f32 %v907, %v1119
    %v1161 = vmul.f32 %v909, %v1123
    %v1162 = vmul.f32 %v911, %v1127
    %v1163 = vmul.f32 %v913, %v1131
    %1180 = vset.pattern.permute.xlu0 0
    %1181 = vperm.xlu0 %1180, %v1148
    %v1182 = vpop.permute.xlu0 %1181
    %1183 = vset.pattern.permute.xlu0 0
    %1184 = vperm.xlu0 %1183, %v1149
    %v1185 = vpop.permute.xlu0 %1184
    %1186 = vset.pattern.permute.xlu0 0
    %1187 = vperm.xlu0 %1186, %v1150
    %v1188 = vpop.permute.xlu0 %1187
    %1189 = vset.pattern.permute.xlu0 0
    %1190 = vperm.xlu0 %1189, %v1151
    %v1191 = vpop.permute.xlu0 %1190
    %1192 = vset.pattern.permute.xlu0 0
    %1193 = vperm.xlu0 %1192, %v1152
    %v1194 = vpop.permute.xlu0 %1193
    %1195 = vset.pattern.permute.xlu0 0
    %1196 = vperm.xlu0 %1195, %v1153
    %v1197 = vpop.permute.xlu0 %1196
    %1198 = vset.pattern.permute.xlu0 0
    %1199 = vperm.xlu0 %1198, %v1154
    %v1200 = vpop.permute.xlu0 %1199
    %1201 = vset.pattern.permute.xlu0 0
    %1202 = vperm.xlu0 %1201, %v1155
    %v1203 = vpop.permute.xlu0 %1202
    %1204 = vset.pattern.permute.xlu0 0
    %1205 = vperm.xlu0 %1204, %v1156
    %v1206 = vpop.permute.xlu0 %1205
    %1207 = vset.pattern.permute.xlu0 0
    %1208 = vperm.xlu0 %1207, %v1157
    %v1209 = vpop.permute.xlu0 %1208
    %1210 = vset.pattern.permute.xlu0 0
    %1211 = vperm.xlu0 %1210, %v1158
    %v1212 = vpop.permute.xlu0 %1211
    %1213 = vset.pattern.permute.xlu0 0
    %1214 = vperm.xlu0 %1213, %v1159
    %v1215 = vpop.permute.xlu0 %1214
    %1216 = vset.pattern.permute.xlu0 0
    %1217 = vperm.xlu0 %1216, %v1160
    %v1218 = vpop.permute.xlu0 %1217
    %1219 = vset.pattern.permute.xlu0 0
    %1220 = vperm.xlu0 %1219, %v1161
    %v1221 = vpop.permute.xlu0 %1220
    %1222 = vset.pattern.permute.xlu0 0
    %1223 = vperm.xlu0 %1222, %v1162
    %v1224 = vpop.permute.xlu0 %1223
    %1225 = vset.pattern.permute.xlu0 0
    %1226 = vperm.xlu0 %1225, %v1163
    %v1227 = vpop.permute.xlu0 %1226
    %v1228 = vlaneseq
    %v1229 = vshrl.u32 %v1228, 7
    %v1230 = vsub.s32 %v689, %v1229
    %v1231 = vrot.slane %v1182, %v1230
    %v1232 = vlaneseq
    %v1233 = vshrl.u32 %v1232, 7
    %v1234 = vsub.s32 %v689, %v1233
    %v1235 = vrot.slane %v1185, %v1234
    %v1236 = vlaneseq
    %v1237 = vshrl.u32 %v1236, 7
    %v1238 = vsub.s32 %v689, %v1237
    %v1239 = vrot.slane %v1188, %v1238
    %v1240 = vlaneseq
    %v1241 = vshrl.u32 %v1240, 7
    %v1242 = vsub.s32 %v689, %v1241
    %v1243 = vrot.slane %v1191, %v1242
    %v1244 = vlaneseq
    %v1245 = vshrl.u32 %v1244, 7
    %v1246 = vsub.s32 %v689, %v1245
    %v1247 = vrot.slane %v1194, %v1246
    %v1248 = vlaneseq
    %v1249 = vshrl.u32 %v1248, 7
    %v1250 = vsub.s32 %v689, %v1249
    %v1251 = vrot.slane %v1197, %v1250
    %v1252 = vlaneseq
    %v1253 = vshrl.u32 %v1252, 7
    %v1254 = vsub.s32 %v689, %v1253
    %v1255 = vrot.slane %v1200, %v1254
    %v1256 = vlaneseq
    %v1257 = vshrl.u32 %v1256, 7
    %v1258 = vsub.s32 %v689, %v1257
    %v1259 = vrot.slane %v1203, %v1258
    %v1260 = vlaneseq
    %v1261 = vshrl.u32 %v1260, 7
    %v1262 = vsub.s32 %v689, %v1261
    %v1263 = vrot.slane %v1206, %v1262
    %v1264 = vlaneseq
    %v1265 = vshrl.u32 %v1264, 7
    %v1266 = vsub.s32 %v689, %v1265
    %v1267 = vrot.slane %v1209, %v1266
    %v1268 = vlaneseq
    %v1269 = vshrl.u32 %v1268, 7
    %v1270 = vsub.s32 %v689, %v1269
    %v1271 = vrot.slane %v1212, %v1270
    %v1272 = vlaneseq
    %v1273 = vshrl.u32 %v1272, 7
    %v1274 = vsub.s32 %v689, %v1273
    %v1275 = vrot.slane %v1215, %v1274
    %v1276 = vlaneseq
    %v1277 = vshrl.u32 %v1276, 7
    %v1278 = vsub.s32 %v689, %v1277
    %v1279 = vrot.slane %v1218, %v1278
    %v1280 = vlaneseq
    %v1281 = vshrl.u32 %v1280, 7
    %v1282 = vsub.s32 %v689, %v1281
    %v1283 = vrot.slane %v1221, %v1282
    %v1284 = vlaneseq
    %v1285 = vshrl.u32 %v1284, 7
    %v1286 = vsub.s32 %v689, %v1285
    %v1287 = vrot.slane %v1224, %v1286
    %v1288 = vlaneseq
    %v1289 = vshrl.u32 %v1288, 7
    %v1290 = vsub.s32 %v689, %v1289
    %v1291 = vrot.slane %v1227, %v1290
    %v1292 = vsel %vm754, %v1235, %v1231
    %v1293 = vsel %vm756, %v1239, %v1292
    %v1294 = vsel %vm758, %v1243, %v1293
    %v1295 = vsel %vm760, %v1247, %v1294
    %v1296 = vsel %vm762, %v1251, %v1295
    %v1297 = vsel %vm764, %v1255, %v1296
    %v1298 = vsel %vm766, %v1259, %v1297
    %v1299 = vsel %vm754, %v1267, %v1263
    %v1300 = vsel %vm756, %v1271, %v1299
    %v1301 = vsel %vm758, %v1275, %v1300
    %v1302 = vsel %vm760, %v1279, %v1301
    %v1303 = vsel %vm762, %v1283, %v1302
    %v1304 = vsel %vm764, %v1287, %v1303
    %v1305 = vsel %vm766, %v1291, %v1304
    %1308 = vst.msk [vmem:[%s6] sm:$0xff] %vm777, %v1298
    %1309 = vst.msk [vmem:[%s6 + $0x8] sm:$0xff] %vm777, %v1305
    %v1326 = vmul.f32 %v81, %v1182
    %v1327 = vmul.f32 %v82, %v1185
    %v1328 = vmul.f32 %v83, %v1188
    %v1329 = vmul.f32 %v84, %v1191
    %v1330 = vmul.f32 %v85, %v1194
    %v1331 = vmul.f32 %v86, %v1197
    %v1332 = vmul.f32 %v87, %v1200
    %v1333 = vmul.f32 %v88, %v1203
    %v1334 = vmul.f32 %v89, %v1206
    %v1335 = vmul.f32 %v90, %v1209
    %v1336 = vmul.f32 %v91, %v1212
    %v1337 = vmul.f32 %v92, %v1215
    %v1338 = vmul.f32 %v93, %v1218
    %v1339 = vmul.f32 %v94, %v1221
    %v1340 = vmul.f32 %v95, %v1224
    %v1341 = vmul.f32 %v96, %v1227
    %v1342 = vsel %vm103, %v1326, 0.0
    %v1343 = vrot.slane %v1342, 4
    %v1344 = vadd.f32 %v1342, %v1343
    %v1345 = vrot.slane %v1344, 2
    %v1346 = vadd.f32 %v1344, %v1345
    %v1347 = vrot.slane %v1346, 1
    %v1348 = vadd.f32 %v1346, %v1347
    %v1349 = vsel %vm103, %v1327, 0.0
    %v1350 = vrot.slane %v1349, 4
    %v1351 = vadd.f32 %v1349, %v1350
    %v1352 = vrot.slane %v1351, 2
    %v1353 = vadd.f32 %v1351, %v1352
    %v1354 = vrot.slane %v1353, 1
    %v1355 = vadd.f32 %v1353, %v1354
    %v1356 = vsel %vm103, %v1328, 0.0
    %v1357 = vrot.slane %v1356, 4
    %v1358 = vadd.f32 %v1356, %v1357
    %v1359 = vrot.slane %v1358, 2
    %v1360 = vadd.f32 %v1358, %v1359
    %v1361 = vrot.slane %v1360, 1
    %v1362 = vadd.f32 %v1360, %v1361
    %v1363 = vsel %vm103, %v1329, 0.0
    %v1364 = vrot.slane %v1363, 4
    %v1365 = vadd.f32 %v1363, %v1364
    %v1366 = vrot.slane %v1365, 2
    %v1367 = vadd.f32 %v1365, %v1366
    %v1368 = vrot.slane %v1367, 1
    %v1369 = vadd.f32 %v1367, %v1368
    %v1370 = vsel %vm103, %v1330, 0.0
    %v1371 = vrot.slane %v1370, 4
    %v1372 = vadd.f32 %v1370, %v1371
    %v1373 = vrot.slane %v1372, 2
    %v1374 = vadd.f32 %v1372, %v1373
    %v1375 = vrot.slane %v1374, 1
    %v1376 = vadd.f32 %v1374, %v1375
    %v1377 = vsel %vm103, %v1331, 0.0
    %v1378 = vrot.slane %v1377, 4
    %v1379 = vadd.f32 %v1377, %v1378
    %v1380 = vrot.slane %v1379, 2
    %v1381 = vadd.f32 %v1379, %v1380
    %v1382 = vrot.slane %v1381, 1
    %v1383 = vadd.f32 %v1381, %v1382
    %v1384 = vsel %vm103, %v1332, 0.0
    %v1385 = vrot.slane %v1384, 4
    %v1386 = vadd.f32 %v1384, %v1385
    %v1387 = vrot.slane %v1386, 2
    %v1388 = vadd.f32 %v1386, %v1387
    %v1389 = vrot.slane %v1388, 1
    %v1390 = vadd.f32 %v1388, %v1389
    %v1391 = vsel %vm103, %v1333, 0.0
    %v1392 = vrot.slane %v1391, 4
    %v1393 = vadd.f32 %v1391, %v1392
    %v1394 = vrot.slane %v1393, 2
    %v1395 = vadd.f32 %v1393, %v1394
    %v1396 = vrot.slane %v1395, 1
    %v1397 = vadd.f32 %v1395, %v1396
    %v1398 = vsel %vm103, %v1334, 0.0
    %v1399 = vrot.slane %v1398, 4
    %v1400 = vadd.f32 %v1398, %v1399
    %v1401 = vrot.slane %v1400, 2
    %v1402 = vadd.f32 %v1400, %v1401
    %v1403 = vrot.slane %v1402, 1
    %v1404 = vadd.f32 %v1402, %v1403
    %v1405 = vsel %vm103, %v1335, 0.0
    %v1406 = vrot.slane %v1405, 4
    %v1407 = vadd.f32 %v1405, %v1406
    %v1408 = vrot.slane %v1407, 2
    %v1409 = vadd.f32 %v1407, %v1408
    %v1410 = vrot.slane %v1409, 1
    %v1411 = vadd.f32 %v1409, %v1410
    %v1412 = vsel %vm103, %v1336, 0.0
    %v1413 = vrot.slane %v1412, 4
    %v1414 = vadd.f32 %v1412, %v1413
    %v1415 = vrot.slane %v1414, 2
    %v1416 = vadd.f32 %v1414, %v1415
    %v1417 = vrot.slane %v1416, 1
    %v1418 = vadd.f32 %v1416, %v1417
    %v1419 = vsel %vm103, %v1337, 0.0
    %v1420 = vrot.slane %v1419, 4
    %v1421 = vadd.f32 %v1419, %v1420
    %v1422 = vrot.slane %v1421, 2
    %v1423 = vadd.f32 %v1421, %v1422
    %v1424 = vrot.slane %v1423, 1
    %v1425 = vadd.f32 %v1423, %v1424
    %v1426 = vsel %vm103, %v1338, 0.0
    %v1427 = vrot.slane %v1426, 4
    %v1428 = vadd.f32 %v1426, %v1427
    %v1429 = vrot.slane %v1428, 2
    %v1430 = vadd.f32 %v1428, %v1429
    %v1431 = vrot.slane %v1430, 1
    %v1432 = vadd.f32 %v1430, %v1431
    %v1433 = vsel %vm103, %v1339, 0.0
    %v1434 = vrot.slane %v1433, 4
    %v1435 = vadd.f32 %v1433, %v1434
    %v1436 = vrot.slane %v1435, 2
    %v1437 = vadd.f32 %v1435, %v1436
    %v1438 = vrot.slane %v1437, 1
    %v1439 = vadd.f32 %v1437, %v1438
    %v1440 = vsel %vm103, %v1340, 0.0
    %v1441 = vrot.slane %v1440, 4
    %v1442 = vadd.f32 %v1440, %v1441
    %v1443 = vrot.slane %v1442, 2
    %v1444 = vadd.f32 %v1442, %v1443
    %v1445 = vrot.slane %v1444, 1
    %v1446 = vadd.f32 %v1444, %v1445
    %v1447 = vsel %vm103, %v1341, 0.0
    %v1448 = vrot.slane %v1447, 4
    %v1449 = vadd.f32 %v1447, %v1448
    %v1450 = vrot.slane %v1449, 2
    %v1451 = vadd.f32 %v1449, %v1450
    %v1452 = vrot.slane %v1451, 1
    %v1453 = vadd.f32 %v1451, %v1452
    %v1470 = vsel %vm754, %v1355, %v1348
    %v1471 = vsel %vm756, %v1362, %v1470
    %v1472 = vsel %vm758, %v1369, %v1471
    %v1473 = vsel %vm760, %v1376, %v1472
    %v1474 = vsel %vm762, %v1383, %v1473
    %v1475 = vsel %vm764, %v1390, %v1474
    %v1476 = vsel %vm766, %v1397, %v1475
    %v1477 = vsel %vm754, %v1411, %v1404
    %v1478 = vsel %vm756, %v1418, %v1477
    %v1479 = vsel %vm758, %v1425, %v1478
    %v1480 = vsel %vm760, %v1432, %v1479
    %v1481 = vsel %vm762, %v1439, %v1480
    %v1482 = vsel %vm764, %v1446, %v1481
    %v1483 = vsel %vm766, %v1453, %v1482
    %1486 = vst.msk [vmem:[#allocation10] sm:$0xff] %vm103, %v1476
    %1487 = vst.msk [vmem:[#allocation10 + $0x8] sm:$0xff] %vm103, %v1483
    // Predicated region
    $region42: #{tpu_custom_call.1} parent=1 // pred_check
      _
    $region43: #{tpu_custom_call.1} parent=1 // pred_check_branch
      %1489 = sbr.rel (0) target = $region45
    $region44: #{tpu_custom_call.1} parent=1 // pred_region
      _
    $region45: #{tpu_custom_call.1} parent=1 // pred_fallthru
      _
    // Predicated region
    $region46: #{tpu_custom_call.1} parent=1 // pred_check
      _
    $region47: #{tpu_custom_call.1} parent=1 // pred_check_branch
      %1491 = sbr.rel (0) target = $region49
    $region48: #{tpu_custom_call.1} parent=1 // pred_region
      %s1493 = ssub.s32 256, 256
      %1494 = vsyncadd [#allocation4], %s1493
      %s1495 = sshll.u32 [#allocation10], 4
      %s1496 = int_to_ptr.vmem [resolvable:$true] %s1495
      %1501 = dma.vmem_to_hbm [thread:$0]  %s1496, 256, %s7, [#allocation4], 128, 128, 8
    $region49: #{tpu_custom_call.1} parent=1 // pred_fallthru
      _
    // Predicated region
    $region50: #{tpu_custom_call.1} parent=1 // pred_check
      _
    $region51: #{tpu_custom_call.1} parent=1 // pred_check_branch
      %1503 = sbr.rel (0) target = $region53
    $region52: #{tpu_custom_call.1} parent=1 // pred_region
      _
    $region53: #{tpu_custom_call.1} parent=1 // pred_fallthru
      _
    // Predicated region
    $region54: #{tpu_custom_call.1} parent=1 // pred_check
      _
    $region55: #{tpu_custom_call.1} parent=1 // pred_check_branch
      %1505 = sbr.rel (0) target = $region57
    $region56: #{tpu_custom_call.1} parent=1 // pred_region
      %1506 = dma.done [#allocation4], 256
    $region57: #{tpu_custom_call.1} parent=1 // pred_fallthru
      _
    %1507 = vsyncpa [#allocation3], 1
    %1508 = vsyncpa [#allocation6], 1
    %1509 = vsyncpa [#allocation9], 1
    %1510 = vsyncpa [#allocation4], 1

</llo_original>
